<compile_context>
chip_gen: v5e
topology: v5e:2x2
jax: 0.10.0
libtpu: 0.0.40
codegen_flags: <defaults>
</compile_context>

<pallas_src>
import functools

import jax
import jax.numpy as jnp
from jax.experimental import pallas as pl
from jax.experimental.pallas import tpu as pltpu

EPS = 1e-5
LANE = 128


def _round_up(x, m):
    return (x + m - 1) // m * m


def _vmem_budget_bytes():
    """~75% of physical VMEM: ~96 MiB on v5e/v6e (128 MiB phys), ~48 MiB on v7x
    (64 MiB phys).  Conservative 48 MiB fallback if the query is unavailable."""
    cap = 64 * 1024 * 1024
    try:
        info = pltpu.get_tpu_info()
        cap = int(getattr(info, "vmem_capacity_bytes", cap)) or cap
    except Exception:
        pass
    return max(32 * 1024 * 1024, min(cap * 3 // 4, 112 * 1024 * 1024))


VMEM_BUDGET = _vmem_budget_bytes()


def _choose_tm(m, cap):
    """Row tile: multiple of 16 (bf16 sublane packing), <= cap, and — whenever
    m allows — yielding an even number (>= 2) of grid tiles so the 1-D
    "parallel" grid keeps both v7x TensorCores busy."""
    m16 = _round_up(max(int(m), 1), 16)
    cap = max(16, int(cap) - int(cap) % 16)
    tm = min(cap, m16)
    if m16 > 16:
        n = -(-m16 // tm)
        if n < 2 or n % 2:
            n = max(2, n + (n % 2))
            tm = min(cap, _round_up(-(-m16 // n), 16))
    return tm


def _matmul_tm_cap(kp, w_cols, out_cols, budget):
    """Largest M tile (<= 2048) whose per-step VMEM footprint fits: bf16 patch
    tile + bf16 outputs double-buffered, bf16 weight (counted 2x for safety),
    plus the f32 accumulator living in the kernel body."""
    weight_bytes = kp * w_cols * 2
    per_row = 2 * kp * 2                              # patch tile, 2 buffers, bf16
    per_row += sum(2 * c * 2 for c in out_cols)       # bf16 outputs, 2 buffers
    per_row += w_cols * 4                             # f32 accumulator (internal)
    avail = budget * 3 // 4 - 2 * weight_bytes
    return max(128, min(2048, avail // per_row))


def _compiler_params():
    return pltpu.CompilerParams(
        dimension_semantics=("parallel",),   # shard M tiles across TensorCores
        vmem_limit_bytes=VMEM_BUDGET,
    )


def _const_weight_spec(shape):
    """Weight block index never changes across the grid; request a single
    buffer so the (potentially large) weight is not double-buffered in VMEM."""
    idx = lambda i: (0, 0)
    try:
        return pl.BlockSpec(shape, idx, pipeline_mode=pl.Buffered(1))
    except TypeError:  # older jax without the pipeline_mode kwarg
        return pl.BlockSpec(shape, idx)


# ----------------------------- Pallas kernels ------------------------------


def _conv1_shortcut_kernel(p_ref, w_ref, y1_ref, ex_ref, st_ref, *, cp):
    """Merged [conv1 | shortcut] matmul + per-tile BN partial statistics."""
    acc = jnp.dot(p_ref[...], w_ref[...], preferred_element_type=jnp.float32)
    y1 = acc[:, :cp]
    ex = acc[:, cp:]
    y1_ref[...] = y1.astype(y1_ref.dtype)      # bf16 store: halves HBM traffic
    ex_ref[...] = ex.astype(ex_ref.dtype)
    stats = jnp.concatenate(                   # stats stay f32 (from accumulator)
        [jnp.sum(y1, axis=0, keepdims=True),
         jnp.sum(y1 * y1, axis=0, keepdims=True),
         jnp.sum(ex, axis=0, keepdims=True),
         jnp.sum(ex * ex, axis=0, keepdims=True)], axis=0)
    st_ref[0] = stats


def _bn_relu_kernel(y_ref, sc_ref, sh_ref, o_ref):
    """y * scale + shift, ReLU; scale/shift already hold the global BN stats."""
    y = y_ref[...].astype(jnp.float32)
    o_ref[...] = jnp.maximum(y * sc_ref[...] + sh_ref[...], 0.0).astype(o_ref.dtype)


def _conv2_kernel(p_ref, w_ref, y2_ref, st_ref):
    """conv2 matmul + per-tile BN partial statistics."""
    acc = jnp.dot(p_ref[...], w_ref[...], preferred_element_type=jnp.float32)
    y2_ref[...] = acc.astype(y2_ref.dtype)     # bf16 store
    stats = jnp.concatenate(
        [jnp.sum(acc, axis=0, keepdims=True),
         jnp.sum(acc * acc, axis=0, keepdims=True)], axis=0)
    st_ref[0] = stats


def _bn2_bne_add_relu_kernel(y2_ref, ex_ref, sc2_ref, sh2_ref, sce_ref, she_ref,
                             o_ref):
    """relu( bn2(conv2_out) + bnE(shortcut_out) ) with precomputed scale/shift."""
    y2 = y2_ref[...].astype(jnp.float32)
    ex = ex_ref[...].astype(jnp.float32)
    o_ref[...] = jnp.maximum(
        y2 * sc2_ref[...] + sh2_ref[...] + ex * sce_ref[...] + she_ref[...],
        0.0).astype(o_ref.dtype)


# ----------------------------- Pallas wrappers ------------------------------


def _conv1_shortcut(patches, w_merged, tm, cp):
    m_pad, k1p = patches.shape
    n_tiles = m_pad // tm
    flops = 2 * m_pad * k1p * (2 * cp)
    bytes_acc = (patches.size * 2 + w_merged.size * 2
                 + 2 * m_pad * cp * 2          # y1 + extra (bf16)
                 + n_tiles * 4 * cp * 4)       # partial stats
    kernel = functools.partial(_conv1_shortcut_kernel, cp=cp)
    return pl.pallas_call(
        kernel,
        out_shape=(
            jax.ShapeDtypeStruct((m_pad, cp), jnp.bfloat16),       # conv1 out
            jax.ShapeDtypeStruct((m_pad, cp), jnp.bfloat16),       # shortcut out
            jax.ShapeDtypeStruct((n_tiles, 4, cp), jnp.float32),   # partial stats
        ),
        grid=(n_tiles,),
        in_specs=[
            pl.BlockSpec((tm, k1p), lambda i: (i, 0)),
            _const_weight_spec((k1p, 2 * cp)),
        ],
        out_specs=(
            pl.BlockSpec((tm, cp), lambda i: (i, 0)),
            pl.BlockSpec((tm, cp), lambda i: (i, 0)),
            pl.BlockSpec((1, 4, cp), lambda i: (i, 0, 0)),
        ),
        compiler_params=_compiler_params(),
        cost_estimate=pl.CostEstimate(flops=flops, transcendentals=0,
                                      bytes_accessed=bytes_acc),
    )(patches, w_merged)


def _bn_relu(y, scale, shift, tm):
    m_pad, cp = y.shape
    n_tiles = m_pad // tm
    bytes_acc = m_pad * cp * 2 + 2 * cp * 4 + m_pad * cp * 2
    return pl.pallas_call(
        _bn_relu_kernel,
        out_shape=jax.ShapeDtypeStruct((m_pad, cp), jnp.bfloat16),
        grid=(n_tiles,),
        in_specs=[
            pl.BlockSpec((tm, cp), lambda i: (i, 0)),
            pl.BlockSpec((1, cp), lambda i: (0, 0)),
            pl.BlockSpec((1, cp), lambda i: (0, 0)),
        ],
        out_specs=pl.BlockSpec((tm, cp), lambda i: (i, 0)),
        compiler_params=_compiler_params(),
        cost_estimate=pl.CostEstimate(flops=3 * m_pad * cp, transcendentals=0,
                                      bytes_accessed=bytes_acc),
    )(y, scale, shift)


def _conv2(patches, w2, tm, cp):
    m_pad, k2p = patches.shape
    n_tiles = m_pad // tm
    flops = 2 * m_pad * k2p * cp
    bytes_acc = (patches.size * 2 + w2.size * 2
                 + m_pad * cp * 2              # y2 (bf16)
                 + n_tiles * 2 * cp * 4)       # partial stats
    return pl.pallas_call(
        _conv2_kernel,
        out_shape=(
            jax.ShapeDtypeStruct((m_pad, cp), jnp.bfloat16),
            jax.ShapeDtypeStruct((n_tiles, 2, cp), jnp.float32),
        ),
        grid=(n_tiles,),
        in_specs=[
            pl.BlockSpec((tm, k2p), lambda i: (i, 0)),
            _const_weight_spec((k2p, cp)),
        ],
        out_specs=(
            pl.BlockSpec((tm, cp), lambda i: (i, 0)),
            pl.BlockSpec((1, 2, cp), lambda i: (i, 0, 0)),
        ),
        compiler_params=_compiler_params(),
        cost_estimate=pl.CostEstimate(flops=flops, transcendentals=0,
                                      bytes_accessed=bytes_acc),
    )(patches, w2)


def _bn_add_relu(y2, extra, sc2, sh2, sce, she, tm):
    m_pad, cp = y2.shape
    n_tiles = m_pad // tm
    bytes_acc = 2 * m_pad * cp * 2 + 4 * cp * 4 + m_pad * cp * 4
    return pl.pallas_call(
        _bn2_bne_add_relu_kernel,
        out_shape=jax.ShapeDtypeStruct((m_pad, cp), jnp.float32),
        grid=(n_tiles,),
        in_specs=[
            pl.BlockSpec((tm, cp), lambda i: (i, 0)),
            pl.BlockSpec((tm, cp), lambda i: (i, 0)),
            pl.BlockSpec((1, cp), lambda i: (0, 0)),
            pl.BlockSpec((1, cp), lambda i: (0, 0)),
            pl.BlockSpec((1, cp), lambda i: (0, 0)),
            pl.BlockSpec((1, cp), lambda i: (0, 0)),
        ],
        out_specs=pl.BlockSpec((tm, cp), lambda i: (i, 0)),
        compiler_params=_compiler_params(),
        cost_estimate=pl.CostEstimate(flops=6 * m_pad * cp, transcendentals=0,
                                      bytes_accessed=bytes_acc),
    )(y2, extra, sc2, sh2, sce, she)


# ------------------------------- JAX glue -----------------------------------


def _im2col(x_nhwc, ksize, stride, padding):
    """Extract conv patches: returns ((N*Ho*Wo, k*k*C), Ho, Wo); order (kh,kw,c)."""
    N, H, W, C = x_nhwc.shape
    if padding > 0:
        x_nhwc = jnp.pad(
            x_nhwc, ((0, 0), (padding, padding), (padding, padding), (0, 0)))
    Ho = (H + 2 * padding - ksize) // stride + 1
    Wo = (W + 2 * padding - ksize) // stride + 1
    cols = []
    for kh in range(ksize):
        for kw in range(ksize):
            cols.append(
                x_nhwc[:, kh:kh + Ho * stride:stride, kw:kw + Wo * stride:stride, :])
    p = jnp.concatenate(cols, axis=-1)               # (N, Ho, Wo, k*k*C)
    return p.reshape(N * Ho * Wo, ksize * ksize * C), Ho, Wo


def _torch_weight_to_2d(w_oihw):
    """(C_out, C_in, KH, KW) -> (KH*KW*C_in, C_out), matching _im2col order."""
    cout = w_oihw.shape[0]
    return jnp.transpose(w_oihw, (2, 3, 1, 0)).reshape(-1, cout)


def _pad2d(x, rows, cols):
    pr, pc = rows - x.shape[0], cols - x.shape[1]
    if pr == 0 and pc == 0:
        return x
    return jnp.pad(x, ((0, pr), (0, pc)))


def _pad_rows(x, m_pad):
    return x if x.shape[0] == m_pad else jnp.pad(x, ((0, m_pad - x.shape[0]), (0, 0)))


def _pad_vec(v, c_pad):
    return v if v.shape[0] == c_pad else jnp.pad(v, (0, c_pad - v.shape[0]))


def _bn_scale_shift(s, q, m, gamma_pad, beta_pad):
    """Training-mode BN (biased variance) folded into per-channel scale/shift.
    Note: E[x^2]-E[x]^2 form; f32, clamped at 0 (small drift vs. two-pass)."""
    mean = s / m
    var = jnp.maximum(q / m - mean * mean, 0.0)
    scale = gamma_pad * jax.lax.rsqrt(var + EPS)
    shift = beta_pad - mean * scale
    return scale, shift


def init_params(key, in_channels, out_channels):
    ks = jax.random.split(key, 3)
    scale = 0.1
    # NOTE: conv biases are intentionally omitted — every conv here is followed
    # by a training-mode BatchNorm, whose mean subtraction cancels a per-channel
    # constant exactly, so biases do not affect the forward output.
    return {
        "w1": scale * jax.random.normal(ks[0], (out_channels, in_channels, 3, 3), jnp.float32),
        "w2": scale * jax.random.normal(ks[1], (out_channels, out_channels, 3, 3), jnp.float32),
        "we": scale * jax.random.normal(ks[2], (out_channels, in_channels, 1, 1), jnp.float32),
        "g_bn1": jnp.ones((out_channels,), jnp.float32),
        "b_bn1": jnp.zeros((out_channels,), jnp.float32),
        "g_bn2": jnp.ones((out_channels,), jnp.float32),
        "b_bn2": jnp.zeros((out_channels,), jnp.float32),
        "g_bne": jnp.ones((out_channels,), jnp.float32),
        "b_bne": jnp.zeros((out_channels,), jnp.float32),
    }


@functools.partial(jax.jit, static_argnames=("stride",))
def restnet_down_block(x_nchw, params, stride):
    """Forward pass of RestNetDownBlock.  x is NCHW; returns NCHW."""
    s0, s1 = stride
    N, c_in = x_nchw.shape[0], x_nchw.shape[1]
    c_out = params["w1"].shape[0]
    cp = _round_up(c_out, LANE)                       # lane-dense channel width
    k1 = 9 * c_in
    k1p = _round_up(k1, LANE)                         # lane-aligned patch K
    k2 = 9 * c_out
    k2p = _round_up(k2, LANE)

    x_nhwc = jnp.transpose(x_nchw, (0, 2, 3, 1)).astype(jnp.float32)

    # ---- kernel A: conv1 (3x3, stride s0, pad 1) + 1x1 shortcut, one matmul.
    p1, ho1, wo1 = _im2col(x_nhwc, ksize=3, stride=s0, padding=1)
    m1 = N * ho1 * wo1

    # M tile from the VMEM budget of the two matmul kernels (shared so every
    # intermediate uses one padded-M layout).
    tm = _choose_tm(m1, min(_matmul_tm_cap(k1p, 2 * cp, [cp, cp], VMEM_BUDGET),
                            _matmul_tm_cap(k2p, cp, [cp], VMEM_BUDGET)))
    m1p = _round_up(m1, tm)

    p1 = _pad_rows(_pad2d(p1, p1.shape[0], k1p), m1p).astype(jnp.bfloat16)

    w1_2d = _pad2d(_torch_weight_to_2d(params["w1"]), k1p, cp)       # (k1p, cp)
    we_2d = params["we"].reshape(c_out, c_in).T                       # (c_in, c_out)
    center = 4 * c_in                                                 # (kh=1, kw=1) tap
    we_embed = jnp.pad(we_2d, ((center, k1p - center - c_in), (0, cp - c_out)))
    w_merged = jnp.concatenate([w1_2d, we_embed], axis=1).astype(jnp.bfloat16)

    y1_pad, extra_pad, stats_a = _conv1_shortcut(p1, w_merged, tm, cp)

    sa = jnp.sum(stats_a, axis=0)                                     # (4, cp)
    g1, b1 = _pad_vec(params["g_bn1"], cp), _pad_vec(params["b_bn1"], cp)
    ge, be = _pad_vec(params["g_bne"], cp), _pad_vec(params["b_bne"], cp)
    scale1, shift1 = _bn_scale_shift(sa[0], sa[1], float(m1), g1, b1)
    scale_e, shift_e = _bn_scale_shift(sa[2], sa[3], float(m1), ge, be)

    # ---- kernel B: bn1 + relu (global stats), bf16 output feeds conv2.
    y1n = _bn_relu(y1_pad, scale1[None, :], shift1[None, :], tm)

    # ---- kernel C: conv2 (3x3, stride s1, pad 1) as a tiled matmul.
    y1n_nhwc = y1n[:m1, :c_out].reshape(N, ho1, wo1, c_out)
    p2, ho2, wo2 = _im2col(y1n_nhwc, ksize=3, stride=s1, padding=1)
    m2 = N * ho2 * wo2
    assert m2 == m1, ("shortcut add requires conv2 to preserve spatial size "
                      "(stride[1] == 1), as in the PyTorch module")
    p2 = _pad_rows(_pad2d(p2, p2.shape[0], k2p), m1p).astype(jnp.bfloat16)
    w2_2d = _pad2d(_torch_weight_to_2d(params["w2"]), k2p, cp).astype(jnp.bfloat16)

    y2_pad, stats_c = _conv2(p2, w2_2d, tm, cp)

    sc = jnp.sum(stats_c, axis=0)                                     # (2, cp)
    g2, b2 = _pad_vec(params["g_bn2"], cp), _pad_vec(params["b_bn2"], cp)
    scale2, shift2 = _bn_scale_shift(sc[0], sc[1], float(m2), g2, b2)

    # ---- kernel D: relu( bn2(y2) + bnE(extra) ), fully fused.
    out_pad = _bn_add_relu(y2_pad, extra_pad,
                           scale2[None, :], shift2[None, :],
                           scale_e[None, :], shift_e[None, :], tm)

    out = out_pad[:m2, :c_out].reshape(N, ho2, wo2, c_out)
    return jnp.transpose(out, (0, 3, 1, 2))                          # back to NCHW


# --------------------------------- main --------------------------------------

if __name__ == "__main__":
    key = jax.random.PRNGKey(0)
    k_x, k_p = jax.random.split(key)

    N, C_in, H, W = 2, 4, 16, 16
    C_out = 8
    stride = (2, 1)  # classic ResNet downsample block

    x = jax.random.normal(k_x, (N, C_in, H, W), jnp.float32)
    params = init_params(k_p, C_in, C_out)

    out = restnet_down_block(x, params, stride)
    out = jax.block_until_ready(out)

    expected_shape = (N, C_out, H // (stride[0] * stride[1]), W // (stride[0] * stride[1]))
    assert out.shape == expected_shape, (out.shape, expected_shape)
    assert bool(jnp.all(jnp.isfinite(out))) and bool(jnp.all(out >= 0.0))

    print("KERNEL_OK")
</pallas_src>

<mosaic_0001>
module attributes {stable_mosaic.version = 11 : i64} {
  func.func @_conv1_shortcut_kernel(%arg0: i32, %arg1: memref<64x128xbf16, #tpu.memory_space<vmem>>, %arg2: memref<128x256xbf16, #tpu.memory_space<vmem>>, %arg3: memref<64x128xbf16, #tpu.memory_space<vmem>>, %arg4: memref<64x128xbf16, #tpu.memory_space<vmem>>, %arg5: memref<1x4x128xf32, #tpu.memory_space<vmem>>) attributes {dimension_semantics = [#tpu.dimension_semantics<parallel>], iteration_bounds = array<i64: 2>, scalar_prefetch = 0 : i64, scratch_operands = 0 : i64, tpu.core_type = #tpu.core_type<tc>, window_params = [{transform_indices = @transform_0, window_bounds = array<i64: 64, 128>}, {pipeline_mode = #tpu.pipeline_mode<synchronous>, transform_indices = @transform_1, window_bounds = array<i64: 128, 256>}, {transform_indices = @transform_2, window_bounds = array<i64: 64, 128>}, {transform_indices = @transform_3, window_bounds = array<i64: 64, 128>}, {transform_indices = @transform_4, window_bounds = array<i64: 1, 4, 128>}]} {
    %c0 = arith.constant 0 : index
    %c0_0 = arith.constant 0 : index
    %0 = vector.load %arg1[%c0, %c0_0] : memref<64x128xbf16, #tpu.memory_space<vmem>>, vector<64x128xbf16>
    %c0_1 = arith.constant 0 : index
    %c0_2 = arith.constant 0 : index
    %1 = vector.load %arg2[%c0_1, %c0_2] : memref<128x256xbf16, #tpu.memory_space<vmem>>, vector<128x256xbf16>
    %cst = arith.constant dense<0.000000e+00> : vector<64x256xf32>
    %2 = tpu.matmul %0, %1, %cst {dimension_numbers = #tpu.dot_dimension_numbers<[1], [0], [0], [1], [0, 0, 1, 1], [], []>} : vector<64x128xbf16>, vector<128x256xbf16>, vector<64x256xf32> -> vector<64x256xf32>
    %3 = vector.extract_strided_slice %2 {offsets = [0, 0], sizes = [64, 128], strides = [1, 1]} : vector<64x256xf32> to vector<64x128xf32>
    %4 = vector.extract_strided_slice %2 {offsets = [0, 128], sizes = [64, 128], strides = [1, 1]} : vector<64x256xf32> to vector<64x128xf32>
    %5 = arith.truncf %3 : vector<64x128xf32> to vector<64x128xbf16>
    %c0_3 = arith.constant 0 : index
    %c0_4 = arith.constant 0 : index
    %6 = vector.load %arg3[%c0_3, %c0_4] : memref<64x128xbf16, #tpu.memory_space<vmem>>, vector<64x128xbf16>
    tpu.vector_store %arg3[%c0_3, %c0_4], %5 {strides = array<i32>} : memref<64x128xbf16, #tpu.memory_space<vmem>>, vector<64x128xbf16>,
    %7 = arith.truncf %4 : vector<64x128xf32> to vector<64x128xbf16>
    %c0_5 = arith.constant 0 : index
    %c0_6 = arith.constant 0 : index
    %8 = vector.load %arg4[%c0_5, %c0_6] : memref<64x128xbf16, #tpu.memory_space<vmem>>, vector<64x128xbf16>
    tpu.vector_store %arg4[%c0_5, %c0_6], %7 {strides = array<i32>} : memref<64x128xbf16, #tpu.memory_space<vmem>>, vector<64x128xbf16>,
    %cst_7 = arith.constant dense<0.000000e+00> : vector<128xf32>
    %9 = vector.multi_reduction <add>, %3, %cst_7 [0] : vector<64x128xf32> to vector<128xf32>
    %10 = vector.shape_cast %9 : vector<128xf32> to vector<1x128xf32>
    %11 = arith.mulf %3, %3 : vector<64x128xf32>
    %cst_8 = arith.constant dense<0.000000e+00> : vector<128xf32>
    %12 = vector.multi_reduction <add>, %11, %cst_8 [0] : vector<64x128xf32> to vector<128xf32>
    %13 = vector.shape_cast %12 : vector<128xf32> to vector<1x128xf32>
    %cst_9 = arith.constant dense<0.000000e+00> : vector<128xf32>
    %14 = vector.multi_reduction <add>, %4, %cst_9 [0] : vector<64x128xf32> to vector<128xf32>
    %15 = vector.shape_cast %14 : vector<128xf32> to vector<1x128xf32>
    %16 = arith.mulf %4, %4 : vector<64x128xf32>
    %cst_10 = arith.constant dense<0.000000e+00> : vector<128xf32>
    %17 = vector.multi_reduction <add>, %16, %cst_10 [0] : vector<64x128xf32> to vector<128xf32>
    %18 = vector.shape_cast %17 : vector<128xf32> to vector<1x128xf32>
    %19 = tpu.concatenate %10, %13, %15, %18 in 0 : vector<1x128xf32>, vector<1x128xf32>, vector<1x128xf32>, vector<1x128xf32> -> vector<4x128xf32>
    %c0_11 = arith.constant 0 : index
    %c0_12 = arith.constant 0 : index
    %c0_13 = arith.constant 0 : index
    %20 = vector.load %arg5[%c0_11, %c0_12, %c0_13] : memref<1x4x128xf32, #tpu.memory_space<vmem>>, vector<1x4x128xf32>
    %21 = vector.shape_cast %20 : vector<1x4x128xf32> to vector<4x128xf32>
    %22 = vector.shape_cast %19 : vector<4x128xf32> to vector<1x4x128xf32>
    tpu.vector_store %arg5[%c0_11, %c0_12, %c0_13], %22 {strides = array<i32>} : memref<1x4x128xf32, #tpu.memory_space<vmem>>, vector<1x4x128xf32>,
    return
  }
  func.func @transform_0(%arg0: i32) -> (i32, i32) {
    %c0_i32 = arith.constant 0 : i32
    %c0_i32_0 = arith.constant 0 : i32
    return %arg0, %c0_i32 : i32, i32
  }
  func.func @transform_1(%arg0: i32) -> (i32, i32) {
    %c0_i32 = arith.constant 0 : i32
    %c0_i32_0 = arith.constant 0 : i32
    %c0_i32_1 = arith.constant 0 : i32
    return %c0_i32, %c0_i32_0 : i32, i32
  }
  func.func @transform_2(%arg0: i32) -> (i32, i32) {
    %c0_i32 = arith.constant 0 : i32
    %c0_i32_0 = arith.constant 0 : i32
    return %arg0, %c0_i32 : i32, i32
  }
  func.func @transform_3(%arg0: i32) -> (i32, i32) {
    %c0_i32 = arith.constant 0 : i32
    %c0_i32_0 = arith.constant 0 : i32
    return %arg0, %c0_i32 : i32, i32
  }
  func.func @transform_4(%arg0: i32) -> (i32, i32, i32) {
    %c0_i32 = arith.constant 0 : i32
    %c0_i32_0 = arith.constant 0 : i32
    %c0_i32_1 = arith.constant 0 : i32
    return %arg0, %c0_i32, %c0_i32_0 : i32, i32, i32
  }
}

module attributes {stable_mosaic.version = 11 : i64} {
  func.func @_bn_relu_kernel(%arg0: i32, %arg1: memref<64x128xbf16, #tpu.memory_space<vmem>>, %arg2: memref<1x128xf32, #tpu.memory_space<vmem>>, %arg3: memref<1x128xf32, #tpu.memory_space<vmem>>, %arg4: memref<64x128xbf16, #tpu.memory_space<vmem>>) attributes {dimension_semantics = [#tpu.dimension_semantics<parallel>], iteration_bounds = array<i64: 2>, scalar_prefetch = 0 : i64, scratch_operands = 0 : i64, tpu.core_type = #tpu.core_type<tc>, window_params = [{transform_indices = @transform_0, window_bounds = array<i64: 64, 128>}, {pipeline_mode = #tpu.pipeline_mode<synchronous>, transform_indices = @transform_1, window_bounds = array<i64: 1, 128>}, {pipeline_mode = #tpu.pipeline_mode<synchronous>, transform_indices = @transform_2, window_bounds = array<i64: 1, 128>}, {transform_indices = @transform_3, window_bounds = array<i64: 64, 128>}]} {
    %c0 = arith.constant 0 : index
    %c0_0 = arith.constant 0 : index
    %0 = vector.load %arg1[%c0, %c0_0] : memref<64x128xbf16, #tpu.memory_space<vmem>>, vector<64x128xbf16>
    %1 = arith.extf %0 : vector<64x128xbf16> to vector<64x128xf32>
    %c0_1 = arith.constant 0 : index
    %c0_2 = arith.constant 0 : index
    %2 = vector.load %arg2[%c0_1, %c0_2] : memref<1x128xf32, #tpu.memory_space<vmem>>, vector<1x128xf32>
    %3 = vector.broadcast %2 : vector<1x128xf32> to vector<64x128xf32>
    %4 = arith.mulf %1, %3 : vector<64x128xf32>
    %c0_3 = arith.constant 0 : index
    %c0_4 = arith.constant 0 : index
    %5 = vector.load %arg3[%c0_3, %c0_4] : memref<1x128xf32, #tpu.memory_space<vmem>>, vector<1x128xf32>
    %6 = vector.broadcast %5 : vector<1x128xf32> to vector<64x128xf32>
    %7 = arith.addf %4, %6 : vector<64x128xf32>
    %cst = arith.constant 0.000000e+00 : f32
    %8 = vector.broadcast %cst : f32 to vector<64x128xf32>
    %9 = arith.maximumf %7, %8 : vector<64x128xf32>
    %10 = arith.truncf %9 : vector<64x128xf32> to vector<64x128xbf16>
    %c0_5 = arith.constant 0 : index
    %c0_6 = arith.constant 0 : index
    %11 = vector.load %arg4[%c0_5, %c0_6] : memref<64x128xbf16, #tpu.memory_space<vmem>>, vector<64x128xbf16>
    tpu.vector_store %arg4[%c0_5, %c0_6], %10 {strides = array<i32>} : memref<64x128xbf16, #tpu.memory_space<vmem>>, vector<64x128xbf16>,
    return
  }
  func.func @transform_0(%arg0: i32) -> (i32, i32) {
    %c0_i32 = arith.constant 0 : i32
    %c0_i32_0 = arith.constant 0 : i32
    return %arg0, %c0_i32 : i32, i32
  }
  func.func @transform_1(%arg0: i32) -> (i32, i32) {
    %c0_i32 = arith.constant 0 : i32
    %c0_i32_0 = arith.constant 0 : i32
    %c0_i32_1 = arith.constant 0 : i32
    return %c0_i32, %c0_i32_0 : i32, i32
  }
  func.func @transform_2(%arg0: i32) -> (i32, i32) {
    %c0_i32 = arith.constant 0 : i32
    %c0_i32_0 = arith.constant 0 : i32
    %c0_i32_1 = arith.constant 0 : i32
    return %c0_i32, %c0_i32_0 : i32, i32
  }
  func.func @transform_3(%arg0: i32) -> (i32, i32) {
    %c0_i32 = arith.constant 0 : i32
    %c0_i32_0 = arith.constant 0 : i32
    return %arg0, %c0_i32 : i32, i32
  }
}

module attributes {stable_mosaic.version = 11 : i64} {
  func.func @_conv2_kernel(%arg0: i32, %arg1: memref<64x128xbf16, #tpu.memory_space<vmem>>, %arg2: memref<128x128xbf16, #tpu.memory_space<vmem>>, %arg3: memref<64x128xbf16, #tpu.memory_space<vmem>>, %arg4: memref<1x2x128xf32, #tpu.memory_space<vmem>>) attributes {dimension_semantics = [#tpu.dimension_semantics<parallel>], iteration_bounds = array<i64: 2>, scalar_prefetch = 0 : i64, scratch_operands = 0 : i64, tpu.core_type = #tpu.core_type<tc>, window_params = [{transform_indices = @transform_0, window_bounds = array<i64: 64, 128>}, {pipeline_mode = #tpu.pipeline_mode<synchronous>, transform_indices = @transform_1, window_bounds = array<i64: 128, 128>}, {transform_indices = @transform_2, window_bounds = array<i64: 64, 128>}, {transform_indices = @transform_3, window_bounds = array<i64: 1, 2, 128>}]} {
    %c0 = arith.constant 0 : index
    %c0_0 = arith.constant 0 : index
    %0 = vector.load %arg1[%c0, %c0_0] : memref<64x128xbf16, #tpu.memory_space<vmem>>, vector<64x128xbf16>
    %c0_1 = arith.constant 0 : index
    %c0_2 = arith.constant 0 : index
    %1 = vector.load %arg2[%c0_1, %c0_2] : memref<128x128xbf16, #tpu.memory_space<vmem>>, vector<128x128xbf16>
    %cst = arith.constant dense<0.000000e+00> : vector<64x128xf32>
    %2 = tpu.matmul %0, %1, %cst {dimension_numbers = #tpu.dot_dimension_numbers<[1], [0], [0], [1], [0, 0, 1, 1], [], []>} : vector<64x128xbf16>, vector<128x128xbf16>, vector<64x128xf32> -> vector<64x128xf32>
    %3 = arith.truncf %2 : vector<64x128xf32> to vector<64x128xbf16>
    %c0_3 = arith.constant 0 : index
    %c0_4 = arith.constant 0 : index
    %4 = vector.load %arg3[%c0_3, %c0_4] : memref<64x128xbf16, #tpu.memory_space<vmem>>, vector<64x128xbf16>
    tpu.vector_store %arg3[%c0_3, %c0_4], %3 {strides = array<i32>} : memref<64x128xbf16, #tpu.memory_space<vmem>>, vector<64x128xbf16>,
    %cst_5 = arith.constant dense<0.000000e+00> : vector<128xf32>
    %5 = vector.multi_reduction <add>, %2, %cst_5 [0] : vector<64x128xf32> to vector<128xf32>
    %6 = vector.shape_cast %5 : vector<128xf32> to vector<1x128xf32>
    %7 = arith.mulf %2, %2 : vector<64x128xf32>
    %cst_6 = arith.constant dense<0.000000e+00> : vector<128xf32>
    %8 = vector.multi_reduction <add>, %7, %cst_6 [0] : vector<64x128xf32> to vector<128xf32>
    %9 = vector.shape_cast %8 : vector<128xf32> to vector<1x128xf32>
    %10 = tpu.concatenate %6, %9 in 0 : vector<1x128xf32>, vector<1x128xf32> -> vector<2x128xf32>
    %c0_7 = arith.constant 0 : index
    %c0_8 = arith.constant 0 : index
    %c0_9 = arith.constant 0 : index
    %11 = vector.load %arg4[%c0_7, %c0_8, %c0_9] : memref<1x2x128xf32, #tpu.memory_space<vmem>>, vector<1x2x128xf32>
    %12 = vector.shape_cast %11 : vector<1x2x128xf32> to vector<2x128xf32>
    %13 = vector.shape_cast %10 : vector<2x128xf32> to vector<1x2x128xf32>
    tpu.vector_store %arg4[%c0_7, %c0_8, %c0_9], %13 {strides = array<i32>} : memref<1x2x128xf32, #tpu.memory_space<vmem>>, vector<1x2x128xf32>,
    return
  }
  func.func @transform_0(%arg0: i32) -> (i32, i32) {
    %c0_i32 = arith.constant 0 : i32
    %c0_i32_0 = arith.constant 0 : i32
    return %arg0, %c0_i32 : i32, i32
  }
  func.func @transform_1(%arg0: i32) -> (i32, i32) {
    %c0_i32 = arith.constant 0 : i32
    %c0_i32_0 = arith.constant 0 : i32
    %c0_i32_1 = arith.constant 0 : i32
    return %c0_i32, %c0_i32_0 : i32, i32
  }
  func.func @transform_2(%arg0: i32) -> (i32, i32) {
    %c0_i32 = arith.constant 0 : i32
    %c0_i32_0 = arith.constant 0 : i32
    return %arg0, %c0_i32 : i32, i32
  }
  func.func @transform_3(%arg0: i32) -> (i32, i32, i32) {
    %c0_i32 = arith.constant 0 : i32
    %c0_i32_0 = arith.constant 0 : i32
    %c0_i32_1 = arith.constant 0 : i32
    return %arg0, %c0_i32, %c0_i32_0 : i32, i32, i32
  }
}

module attributes {stable_mosaic.version = 11 : i64} {
  func.func @_bn2_bne_add_relu_kernel(%arg0: i32, %arg1: memref<64x128xbf16, #tpu.memory_space<vmem>>, %arg2: memref<64x128xbf16, #tpu.memory_space<vmem>>, %arg3: memref<1x128xf32, #tpu.memory_space<vmem>>, %arg4: memref<1x128xf32, #tpu.memory_space<vmem>>, %arg5: memref<1x128xf32, #tpu.memory_space<vmem>>, %arg6: memref<1x128xf32, #tpu.memory_space<vmem>>, %arg7: memref<64x128xf32, #tpu.memory_space<vmem>>) attributes {dimension_semantics = [#tpu.dimension_semantics<parallel>], iteration_bounds = array<i64: 2>, scalar_prefetch = 0 : i64, scratch_operands = 0 : i64, tpu.core_type = #tpu.core_type<tc>, window_params = [{transform_indices = @transform_0, window_bounds = array<i64: 64, 128>}, {transform_indices = @transform_1, window_bounds = array<i64: 64, 128>}, {pipeline_mode = #tpu.pipeline_mode<synchronous>, transform_indices = @transform_2, window_bounds = array<i64: 1, 128>}, {pipeline_mode = #tpu.pipeline_mode<synchronous>, transform_indices = @transform_3, window_bounds = array<i64: 1, 128>}, {pipeline_mode = #tpu.pipeline_mode<synchronous>, transform_indices = @transform_4, window_bounds = array<i64: 1, 128>}, {pipeline_mode = #tpu.pipeline_mode<synchronous>, transform_indices = @transform_5, window_bounds = array<i64: 1, 128>}, {transform_indices = @transform_6, window_bounds = array<i64: 64, 128>}]} {
    %c0 = arith.constant 0 : index
    %c0_0 = arith.constant 0 : index
    %0 = vector.load %arg1[%c0, %c0_0] : memref<64x128xbf16, #tpu.memory_space<vmem>>, vector<64x128xbf16>
    %1 = arith.extf %0 : vector<64x128xbf16> to vector<64x128xf32>
    %c0_1 = arith.constant 0 : index
    %c0_2 = arith.constant 0 : index
    %2 = vector.load %arg2[%c0_1, %c0_2] : memref<64x128xbf16, #tpu.memory_space<vmem>>, vector<64x128xbf16>
    %3 = arith.extf %2 : vector<64x128xbf16> to vector<64x128xf32>
    %c0_3 = arith.constant 0 : index
    %c0_4 = arith.constant 0 : index
    %4 = vector.load %arg3[%c0_3, %c0_4] : memref<1x128xf32, #tpu.memory_space<vmem>>, vector<1x128xf32>
    %5 = vector.broadcast %4 : vector<1x128xf32> to vector<64x128xf32>
    %6 = arith.mulf %1, %5 : vector<64x128xf32>
    %c0_5 = arith.constant 0 : index
    %c0_6 = arith.constant 0 : index
    %7 = vector.load %arg4[%c0_5, %c0_6] : memref<1x128xf32, #tpu.memory_space<vmem>>, vector<1x128xf32>
    %8 = vector.broadcast %7 : vector<1x128xf32> to vector<64x128xf32>
    %9 = arith.addf %6, %8 : vector<64x128xf32>
    %c0_7 = arith.constant 0 : index
    %c0_8 = arith.constant 0 : index
    %10 = vector.load %arg5[%c0_7, %c0_8] : memref<1x128xf32, #tpu.memory_space<vmem>>, vector<1x128xf32>
    %11 = vector.broadcast %10 : vector<1x128xf32> to vector<64x128xf32>
    %12 = arith.mulf %3, %11 : vector<64x128xf32>
    %13 = arith.addf %9, %12 : vector<64x128xf32>
    %c0_9 = arith.constant 0 : index
    %c0_10 = arith.constant 0 : index
    %14 = vector.load %arg6[%c0_9, %c0_10] : memref<1x128xf32, #tpu.memory_space<vmem>>, vector<1x128xf32>
    %15 = vector.broadcast %14 : vector<1x128xf32> to vector<64x128xf32>
    %16 = arith.addf %13, %15 : vector<64x128xf32>
    %cst = arith.constant 0.000000e+00 : f32
    %17 = vector.broadcast %cst : f32 to vector<64x128xf32>
    %18 = arith.maximumf %16, %17 : vector<64x128xf32>
    %c0_11 = arith.constant 0 : index
    %c0_12 = arith.constant 0 : index
    %19 = vector.load %arg7[%c0_11, %c0_12] : memref<64x128xf32, #tpu.memory_space<vmem>>, vector<64x128xf32>
    tpu.vector_store %arg7[%c0_11, %c0_12], %18 {strides = array<i32>} : memref<64x128xf32, #tpu.memory_space<vmem>>, vector<64x128xf32>,
    return
  }
  func.func @transform_0(%arg0: i32) -> (i32, i32) {
    %c0_i32 = arith.constant 0 : i32
    %c0_i32_0 = arith.constant 0 : i32
    return %arg0, %c0_i32 : i32, i32
  }
  func.func @transform_1(%arg0: i32) -> (i32, i32) {
    %c0_i32 = arith.constant 0 : i32
    %c0_i32_0 = arith.constant 0 : i32
    return %arg0, %c0_i32 : i32, i32
  }
  func.func @transform_2(%arg0: i32) -> (i32, i32) {
    %c0_i32 = arith.constant 0 : i32
    %c0_i32_0 = arith.constant 0 : i32
    %c0_i32_1 = arith.constant 0 : i32
    return %c0_i32, %c0_i32_0 : i32, i32
  }
  func.func @transform_3(%arg0: i32) -> (i32, i32) {
    %c0_i32 = arith.constant 0 : i32
    %c0_i32_0 = arith.constant 0 : i32
    %c0_i32_1 = arith.constant 0 : i32
    return %c0_i32, %c0_i32_0 : i32, i32
  }
  func.func @transform_4(%arg0: i32) -> (i32, i32) {
    %c0_i32 = arith.constant 0 : i32
    %c0_i32_0 = arith.constant 0 : i32
    %c0_i32_1 = arith.constant 0 : i32
    return %c0_i32, %c0_i32_0 : i32, i32
  }
  func.func @transform_5(%arg0: i32) -> (i32, i32) {
    %c0_i32 = arith.constant 0 : i32
    %c0_i32_0 = arith.constant 0 : i32
    %c0_i32_1 = arith.constant 0 : i32
    return %c0_i32, %c0_i32_0 : i32, i32
  }
  func.func @transform_6(%arg0: i32) -> (i32, i32) {
    %c0_i32 = arith.constant 0 : i32
    %c0_i32_0 = arith.constant 0 : i32
    return %arg0, %c0_i32 : i32, i32
  }
}

</mosaic_0001>

<llo_original>
// kernel: restnet_down_block.5
$region0: #{restnet_down_block.5}
  #allocation0 [shape = 'u32[]', space=smem, size = 0x4, offset = 0x4, fixed_abs, tag = 'smem constant byte address 0x4 - core index']
  #allocation1 [shape = 'u32[72,128]{1,0:T(1,128)}', space=vmem, size = 0x9000, scoped, tag = 'internal scratch']
  %s0 = inlined_call_operand.vmem [shape: bf16[128,128], index: 0, kind: input, shape index: {}]
  %s1 = inlined_call_operand.vmem [shape: f32[1,128], index: 1, kind: input, shape index: {}]
  %s2 = inlined_call_operand.vmem [shape: f32[1,128], index: 2, kind: input, shape index: {}]
  %s3 = inlined_call_operand.vmem [shape: bf16[128,128], index: 3, kind: output, shape index: {}]
  %s4 = sld [smem:[#allocation0]]
  $region45: #{restnet_down_block.5} parent=0
    _
  %s6 = ssub.s32 1, %s4
  %s7 = scalar_select 0, %s6, %s4
  loop: start=0, step=1, limit=4
  $region2: #{restnet_down_block.5} parent=0 // loop_pre_header
    _
  $region3: #{restnet_down_block.5} parent=0 // loop_header
    %s9 = sphi 0, %s13
    %p10 = scmp.ge.s32.totalorder %s9, 4
    %s19 = sphi 0, %s21
    %s22 = sphi 0, %s19
    %s23 = sphi 0, %s22
    %s39 = sphi 0, %s23
    %s43 = sphi 0, %s43
    %s45 = sphi 0, %s43
    %s46 = sphi 0, %s45
    %s60 = sphi 0, %s46
    %s64 = sphi 0, %s64
    %s66 = sphi 0, %s64
    %s67 = sphi 0, %s66
    %s81 = sphi 0, %s67
    %s87 = sphi 0, %s89
    %s90 = sphi 0, %s87
    %s91 = sphi 0, %s90
    %s107 = sphi 0, %s91
  $region4: #{restnet_down_block.5} parent=0 // loop_header_branch
    %12 = sbr.rel (%p10) target = $region8
  $region5: #{restnet_down_block.5} parent=0 // loop_body
    %s14 = ssub.s32 %s9, 1
    %s15 = ssub.s32 %s9, 2
    %s16 = sadd.s32 %s9, 1
    %s17 = ssub.s32 %s9, %s16
    %p18 = scmp.eq.s32.totalorder %s17, 0
    %s20 = sadd.s32 %s19, 1
    %s21 = scalar_select %p18, %s19, %s20
    %p24 = pneg %p18
    %p25 = scmp.eq.s32.totalorder %s9, 1
    %p26 = por %p24, %p25
    %p27 = scmp.ne.s32.totalorder %s19, %s22
    %p28 = scmp.eq.s32.totalorder %s9, 0
    %p29 = por %p27, %p28
    %p30 = scmp.ne.s32.totalorder %s19, %s22
    %p31 = scmp.eq.s32.totalorder %s14, 1
    %p32 = por %p30, %p31
    %p33 = scmp.ne.s32.totalorder %s22, %s23
    %p34 = scmp.eq.s32.totalorder %s14, 0
    %p35 = por %p33, %p34
    %p36 = scmp.ne.s32.totalorder %s22, %s23
    %p37 = scmp.eq.s32.totalorder %s15, 1
    %p38 = por %p36, %p37
    %p40 = scmp.ne.s32.totalorder %s23, %s39
    %p41 = scmp.eq.s32.totalorder %s15, 0
    %p42 = por %p40, %p41
    %s44 = sadd.s32 %s43, 1
    %p47 = scmp.eq.s32.totalorder %s9, 1
    %p48 = scmp.ne.s32.totalorder %s43, %s45
    %p49 = scmp.eq.s32.totalorder %s9, 0
    %p50 = por %p48, %p49
    %p51 = scmp.ne.s32.totalorder %s43, %s45
    %p52 = scmp.eq.s32.totalorder %s14, 1
    %p53 = por %p51, %p52
    %p54 = scmp.ne.s32.totalorder %s45, %s46
    %p55 = scmp.eq.s32.totalorder %s14, 0
    %p56 = por %p54, %p55
    %p57 = scmp.ne.s32.totalorder %s45, %s46
    %p58 = scmp.eq.s32.totalorder %s15, 1
    %p59 = por %p57, %p58
    %p61 = scmp.ne.s32.totalorder %s46, %s60
    %p62 = scmp.eq.s32.totalorder %s15, 0
    %p63 = por %p61, %p62
    %s65 = sadd.s32 %s64, 1
    %p68 = scmp.eq.s32.totalorder %s9, 1
    %p69 = scmp.ne.s32.totalorder %s64, %s66
    %p70 = scmp.eq.s32.totalorder %s9, 0
    %p71 = por %p69, %p70
    %p72 = scmp.ne.s32.totalorder %s64, %s66
    %p73 = scmp.eq.s32.totalorder %s14, 1
    %p74 = por %p72, %p73
    %p75 = scmp.ne.s32.totalorder %s66, %s67
    %p76 = scmp.eq.s32.totalorder %s14, 0
    %p77 = por %p75, %p76
    %p78 = scmp.ne.s32.totalorder %s66, %s67
    %p79 = scmp.eq.s32.totalorder %s15, 1
    %p80 = por %p78, %p79
    %p82 = scmp.ne.s32.totalorder %s67, %s81
    %p83 = scmp.eq.s32.totalorder %s15, 0
    %p84 = por %p82, %p83
    %s85 = ssub.s32 %s9, %s16
    %p86 = scmp.eq.s32.totalorder %s85, 0
    %s88 = sadd.s32 %s87, 1
    %s89 = scalar_select %p86, %s87, %s88
    %p92 = pneg %p86
    %p93 = scmp.eq.s32.totalorder %s9, 1
    %p94 = por %p92, %p93
    %p95 = scmp.ne.s32.totalorder %s87, %s90
    %p96 = scmp.eq.s32.totalorder %s9, 0
    %p97 = por %p95, %p96
    %p98 = scmp.ne.s32.totalorder %s87, %s90
    %p99 = scmp.eq.s32.totalorder %s14, 1
    %p100 = por %p98, %p99
    %p101 = scmp.ne.s32.totalorder %s90, %s91
    %p102 = scmp.eq.s32.totalorder %s14, 0
    %p103 = por %p101, %p102
    %p104 = scmp.ne.s32.totalorder %s90, %s91
    %p105 = scmp.eq.s32.totalorder %s15, 1
    %p106 = por %p104, %p105
    %p108 = scmp.ne.s32.totalorder %s91, %s107
    %p109 = scmp.eq.s32.totalorder %s15, 0
    %p110 = por %p108, %p109
    %p111 = scmp.le.s32.totalorder 1, %s9
    %p112 = scmp.lt.s32.totalorder %s9, 3
    %p113 = pnand %p111, %p112
    %p114 = pneg %p113
    // Predicated region
    $region9: #{restnet_down_block.5} parent=5 // pred_check
      _
    $region10: #{restnet_down_block.5} parent=5 // pred_check_branch
      %116 = sbr.rel (%p113) target = $region12
    $region11: #{restnet_down_block.5} parent=5 // pred_region
      %s117 = ssub.s32 %s9, 1
      // Predicated region
      $region13: #{restnet_down_block.5} parent=11 // pred_check
        %p118 = pneg %p56
      $region14: #{restnet_down_block.5} parent=11 // pred_check_branch
        %120 = sbr.rel (%p118) target = $region16
      $region15: #{restnet_down_block.5} parent=11 // pred_region
        _
      $region16: #{restnet_down_block.5} parent=11 // pred_fallthru
        _
      // Predicated region
      $region17: #{restnet_down_block.5} parent=11 // pred_check
        %p121 = pneg %p77
      $region18: #{restnet_down_block.5} parent=11 // pred_check_branch
        %123 = sbr.rel (%p121) target = $region20
      $region19: #{restnet_down_block.5} parent=11 // pred_region
        _
      $region20: #{restnet_down_block.5} parent=11 // pred_fallthru
        _
    $region12: #{restnet_down_block.5} parent=5 // pred_fallthru
      _
    %p124 = scmp.lt.s32.totalorder %s9, 2
    // Predicated region
    $region21: #{restnet_down_block.5} parent=5 // pred_check
      %p125 = pneg %p124
    $region22: #{restnet_down_block.5} parent=5 // pred_check_branch
      %127 = sbr.rel (%p125) target = $region24
    $region23: #{restnet_down_block.5} parent=5 // pred_region
      // Predicated region
      $region25: #{restnet_down_block.5} parent=23 // pred_check
        %p128 = pneg %p29
      $region26: #{restnet_down_block.5} parent=23 // pred_check_branch
        %130 = sbr.rel (%p128) target = $region28
      $region27: #{restnet_down_block.5} parent=23 // pred_region
        %s131 = smul.u32 8, %s9
        %p132 = scmp.lt.s32.totalorder %s131, 15
        %s133 = scalar_select %p132, %s131, 15
        %s134 = smul.addr %s133, 4
        %s135 = scalar_lea.vmem %s0, %s134
        %s136 = smul.u32 8, %s9
      $region28: #{restnet_down_block.5} parent=23 // pred_fallthru
        _
    $region24: #{restnet_down_block.5} parent=5 // pred_fallthru
      _
    %p137 = scmp.le.s32.totalorder 1, %s9
    %p138 = scmp.lt.s32.totalorder %s9, 3
    %p139 = pnand %p137, %p138
    %p140 = pneg %p139
    // Predicated region
    $region29: #{restnet_down_block.5} parent=5 // pred_check
      _
    $region30: #{restnet_down_block.5} parent=5 // pred_check_branch
      %142 = sbr.rel (%p139) target = $region32
    $region31: #{restnet_down_block.5} parent=5 // pred_region
      %s143 = ssub.s32 %s9, 1
      %s144 = smul.u32 8, %s14
      %p145 = scmp.lt.s32.totalorder %s144, 15
      %s146 = scalar_select %p145, %s144, 15
      %s147 = smul.addr %s146, 4
      %s148 = scalar_lea.vmem %s0, %s147
      %p149 = pneg %p35
      %p150 = pneg %p32
      %p151 = pneg %p56
      %p152 = pneg %p53
      %p153 = pneg %p77
      %p154 = pneg %p74
      %p155 = pneg %p103
      %p156 = pneg %p100
      %s157 = smul.u32 8, %s14
      %p158 = scmp.lt.s32.totalorder %s157, 15
      %s159 = scalar_select %p158, %s157, 15
      %s160 = smul.addr %s159, 4
      %s161 = scalar_lea.vmem %s3, %s160
      %s162 = smul.u32 8, %s14
      %p163 = scmp.lt.s32.totalorder %s162, 15
      %s164 = scalar_select %p163, %s162, 15
      %s165 = smul.addr %s164, 4
      %s166 = scalar_lea.vmem %s0, %s165
      %s167 = smul.u32 8, %s14
      %s168 = smul.u32 8, %s14
      %p169 = scmp.lt.s32.totalorder %s168, 15
      %s170 = scalar_select %p169, %s168, 15
      %s171 = smul.addr %s170, 4
      %s172 = scalar_lea.vmem %s3, %s171
      %s173 = smul.u32 8, %s14
      %v174 = vld [vmem:[%s166] sm:$0xf]
      %v175 = vld [vmem:[%s166 + $0x4] sm:$0xf]
      %v176 = vld [vmem:[%s166 + $0x8] sm:$0xf]
      %v177 = vld [vmem:[%s166 + $0xc] sm:$0xf]
      %v178 = vld [vmem:[%s166 + $0x10] sm:$0xf]
      %v179 = vld [vmem:[%s166 + $0x14] sm:$0xf]
      %v180 = vld [vmem:[%s166 + $0x18] sm:$0xf]
      %v181 = vld [vmem:[%s166 + $0x1c] sm:$0xf]
      %v182 = vunpack.c.l.bf16 %v174
      %v183 = vunpack.c.l.bf16 %v175
      %v184 = vunpack.c.l.bf16 %v176
      %v185 = vunpack.c.l.bf16 %v177
      %v186 = vunpack.c.l.bf16 %v178
      %v187 = vunpack.c.l.bf16 %v179
      %v188 = vunpack.c.l.bf16 %v180
      %v189 = vunpack.c.l.bf16 %v181
      %v190 = vld [vmem:[%s1] sm:$0x1]
      %v192 = vperm.slane %v190, 0
      %v194 = vmul.f32 %v182, %v192
      %v195 = vmul.f32 %v183, %v192
      %v196 = vmul.f32 %v184, %v192
      %v197 = vmul.f32 %v185, %v192
      %v198 = vmul.f32 %v186, %v192
      %v199 = vmul.f32 %v187, %v192
      %v200 = vmul.f32 %v188, %v192
      %v201 = vmul.f32 %v189, %v192
      %v202 = vld [vmem:[%s2] sm:$0x1]
      %v204 = vperm.slane %v202, 0
      %v206 = vadd.f32 %v194, %v204
      %v207 = vadd.f32 %v195, %v204
      %v208 = vadd.f32 %v196, %v204
      %v209 = vadd.f32 %v197, %v204
      %v210 = vadd.f32 %v198, %v204
      %v211 = vadd.f32 %v199, %v204
      %v212 = vadd.f32 %v200, %v204
      %v213 = vadd.f32 %v201, %v204
      %v214 = vmax.f32 %v206, 0.0
      %v215 = vmax.f32 %v207, 0.0
      %v216 = vmax.f32 %v208, 0.0
      %v217 = vmax.f32 %v209, 0.0
      %v218 = vmax.f32 %v210, 0.0
      %v219 = vmax.f32 %v211, 0.0
      %v220 = vmax.f32 %v212, 0.0
      %v221 = vmax.f32 %v213, 0.0
      %v222 = vpack.c.bf16 %v214, %v214
      %v223 = vpack.c.bf16 %v215, %v215
      %v224 = vpack.c.bf16 %v216, %v216
      %v225 = vpack.c.bf16 %v217, %v217
      %v226 = vpack.c.bf16 %v218, %v218
      %v227 = vpack.c.bf16 %v219, %v219
      %v228 = vpack.c.bf16 %v220, %v220
      %v229 = vpack.c.bf16 %v221, %v221
      %230 = vst [vmem:[%s172] sm:$0xf] %v222
      %231 = vst [vmem:[%s172 + $0x4] sm:$0xf] %v223
      %232 = vst [vmem:[%s172 + $0x8] sm:$0xf] %v224
      %233 = vst [vmem:[%s172 + $0xc] sm:$0xf] %v225
      %234 = vst [vmem:[%s172 + $0x10] sm:$0xf] %v226
      %235 = vst [vmem:[%s172 + $0x14] sm:$0xf] %v227
      %236 = vst [vmem:[%s172 + $0x18] sm:$0xf] %v228
      %237 = vst [vmem:[%s172 + $0x1c] sm:$0xf] %v229
      %s238 = smul.u32 8, %s14
      %p239 = scmp.lt.s32.totalorder %s238, 15
      %s240 = scalar_select %p239, %s238, 15
      %s241 = smul.addr %s240, 4
      %s242 = scalar_lea.vmem %s3, %s241
      // Predicated region
      $region33: #{restnet_down_block.5} parent=31 // pred_check
        %p243 = pneg %p100
      $region34: #{restnet_down_block.5} parent=31 // pred_check_branch
        %245 = sbr.rel (%p243) target = $region36
      $region35: #{restnet_down_block.5} parent=31 // pred_region
        %s246 = smul.u32 8, %s14
      $region36: #{restnet_down_block.5} parent=31 // pred_fallthru
        _
    $region32: #{restnet_down_block.5} parent=5 // pred_fallthru
      _
    %p247 = scmp.le.s32.totalorder 2, %s9
    // Predicated region
    $region37: #{restnet_down_block.5} parent=5 // pred_check
      %p248 = pneg %p247
    $region38: #{restnet_down_block.5} parent=5 // pred_check_branch
      %250 = sbr.rel (%p248) target = $region40
    $region39: #{restnet_down_block.5} parent=5 // pred_region
      %s251 = ssub.s32 %s9, 2
      // Predicated region
      $region41: #{restnet_down_block.5} parent=39 // pred_check
        %p252 = pneg %p106
      $region42: #{restnet_down_block.5} parent=39 // pred_check_branch
        %254 = sbr.rel (%p252) target = $region44
      $region43: #{restnet_down_block.5} parent=39 // pred_region
        %s255 = smul.u32 8, %s15
        %p256 = scmp.lt.s32.totalorder %s255, 15
        %s257 = scalar_select %p256, %s255, 15
        %s258 = smul.addr %s257, 4
        %s259 = scalar_lea.vmem %s3, %s258
      $region44: #{restnet_down_block.5} parent=39 // pred_fallthru
        _
    $region40: #{restnet_down_block.5} parent=5 // pred_fallthru
      _
  $region6: #{restnet_down_block.5} parent=0 // loop_footer
    %s13 = sadd.s32 1, %s9
  $region7: #{restnet_down_block.5} parent=0 // loop_footer_branch
    %8 = sbr.rel target = $region3
  $region8: #{restnet_down_block.5} parent=0 // loop_exit
    _

// kernel: restnet_down_block.4
$region0: #{restnet_down_block.4}
  #allocation0 [shape = 'u32[]', space=smem, size = 0x4, offset = 0x4, fixed_abs, tag = 'smem constant byte address 0x4 - core index']
  #allocation1 [shape = 'u32[72,128]{1,0:T(1,128)}', space=vmem, size = 0x9000, scoped, tag = 'internal scratch']
  %s0 = inlined_call_operand.vmem [shape: bf16[128,128], index: 0, kind: input, shape index: {}]
  %s1 = inlined_call_operand.vmem [shape: bf16[128,256], index: 1, kind: input, shape index: {}]
  %s2 = inlined_call_operand.vmem [shape: bf16[128,128], index: 2, kind: output, shape index: {0}]
  %s3 = inlined_call_operand.vmem [shape: bf16[128,128], index: 3, kind: output, shape index: {1}]
  %s4 = inlined_call_operand.vmem [shape: f32[2,4,128], index: 4, kind: output, shape index: {2}]
  %5 = xla_tuple %s2, %s3, %s4
  %s6 = sld [smem:[#allocation0]]
  $region57: #{restnet_down_block.4} parent=0
    _
  %s8 = ssub.s32 1, %s6
  %s9 = scalar_select 0, %s8, %s6
  loop: start=0, step=1, limit=4
  $region2: #{restnet_down_block.4} parent=0 // loop_pre_header
    _
  $region3: #{restnet_down_block.4} parent=0 // loop_header
    %s11 = sphi 0, %s15
    %p12 = scmp.ge.s32.totalorder %s11, 4
    %s21 = sphi 0, %s23
    %s24 = sphi 0, %s21
    %s25 = sphi 0, %s24
    %s41 = sphi 0, %s25
    %s45 = sphi 0, %s45
    %s47 = sphi 0, %s45
    %s48 = sphi 0, %s47
    %s62 = sphi 0, %s48
    %s68 = sphi 0, %s70
    %s71 = sphi 0, %s68
    %s72 = sphi 0, %s71
    %s88 = sphi 0, %s72
    %s94 = sphi 0, %s96
    %s97 = sphi 0, %s94
    %s98 = sphi 0, %s97
    %s114 = sphi 0, %s98
    %s120 = sphi 0, %s122
    %s123 = sphi 0, %s120
    %s124 = sphi 0, %s123
    %s140 = sphi 0, %s124
  $region4: #{restnet_down_block.4} parent=0 // loop_header_branch
    %14 = sbr.rel (%p12) target = $region8
  $region5: #{restnet_down_block.4} parent=0 // loop_body
    %s16 = ssub.s32 %s11, 1
    %s17 = ssub.s32 %s11, 2
    %s18 = sadd.s32 %s11, 1
    %s19 = ssub.s32 %s11, %s18
    %p20 = scmp.eq.s32.totalorder %s19, 0
    %s22 = sadd.s32 %s21, 1
    %s23 = scalar_select %p20, %s21, %s22
    %p26 = pneg %p20
    %p27 = scmp.eq.s32.totalorder %s11, 1
    %p28 = por %p26, %p27
    %p29 = scmp.ne.s32.totalorder %s21, %s24
    %p30 = scmp.eq.s32.totalorder %s11, 0
    %p31 = por %p29, %p30
    %p32 = scmp.ne.s32.totalorder %s21, %s24
    %p33 = scmp.eq.s32.totalorder %s16, 1
    %p34 = por %p32, %p33
    %p35 = scmp.ne.s32.totalorder %s24, %s25
    %p36 = scmp.eq.s32.totalorder %s16, 0
    %p37 = por %p35, %p36
    %p38 = scmp.ne.s32.totalorder %s24, %s25
    %p39 = scmp.eq.s32.totalorder %s17, 1
    %p40 = por %p38, %p39
    %p42 = scmp.ne.s32.totalorder %s25, %s41
    %p43 = scmp.eq.s32.totalorder %s17, 0
    %p44 = por %p42, %p43
    %s46 = sadd.s32 %s45, 1
    %p49 = scmp.eq.s32.totalorder %s11, 1
    %p50 = scmp.ne.s32.totalorder %s45, %s47
    %p51 = scmp.eq.s32.totalorder %s11, 0
    %p52 = por %p50, %p51
    %p53 = scmp.ne.s32.totalorder %s45, %s47
    %p54 = scmp.eq.s32.totalorder %s16, 1
    %p55 = por %p53, %p54
    %p56 = scmp.ne.s32.totalorder %s47, %s48
    %p57 = scmp.eq.s32.totalorder %s16, 0
    %p58 = por %p56, %p57
    %p59 = scmp.ne.s32.totalorder %s47, %s48
    %p60 = scmp.eq.s32.totalorder %s17, 1
    %p61 = por %p59, %p60
    %p63 = scmp.ne.s32.totalorder %s48, %s62
    %p64 = scmp.eq.s32.totalorder %s17, 0
    %p65 = por %p63, %p64
    %s66 = ssub.s32 %s11, %s18
    %p67 = scmp.eq.s32.totalorder %s66, 0
    %s69 = sadd.s32 %s68, 1
    %s70 = scalar_select %p67, %s68, %s69
    %p73 = pneg %p67
    %p74 = scmp.eq.s32.totalorder %s11, 1
    %p75 = por %p73, %p74
    %p76 = scmp.ne.s32.totalorder %s68, %s71
    %p77 = scmp.eq.s32.totalorder %s11, 0
    %p78 = por %p76, %p77
    %p79 = scmp.ne.s32.totalorder %s68, %s71
    %p80 = scmp.eq.s32.totalorder %s16, 1
    %p81 = por %p79, %p80
    %p82 = scmp.ne.s32.totalorder %s71, %s72
    %p83 = scmp.eq.s32.totalorder %s16, 0
    %p84 = por %p82, %p83
    %p85 = scmp.ne.s32.totalorder %s71, %s72
    %p86 = scmp.eq.s32.totalorder %s17, 1
    %p87 = por %p85, %p86
    %p89 = scmp.ne.s32.totalorder %s72, %s88
    %p90 = scmp.eq.s32.totalorder %s17, 0
    %p91 = por %p89, %p90
    %s92 = ssub.s32 %s11, %s18
    %p93 = scmp.eq.s32.totalorder %s92, 0
    %s95 = sadd.s32 %s94, 1
    %s96 = scalar_select %p93, %s94, %s95
    %p99 = pneg %p93
    %p100 = scmp.eq.s32.totalorder %s11, 1
    %p101 = por %p99, %p100
    %p102 = scmp.ne.s32.totalorder %s94, %s97
    %p103 = scmp.eq.s32.totalorder %s11, 0
    %p104 = por %p102, %p103
    %p105 = scmp.ne.s32.totalorder %s94, %s97
    %p106 = scmp.eq.s32.totalorder %s16, 1
    %p107 = por %p105, %p106
    %p108 = scmp.ne.s32.totalorder %s97, %s98
    %p109 = scmp.eq.s32.totalorder %s16, 0
    %p110 = por %p108, %p109
    %p111 = scmp.ne.s32.totalorder %s97, %s98
    %p112 = scmp.eq.s32.totalorder %s17, 1
    %p113 = por %p111, %p112
    %p115 = scmp.ne.s32.totalorder %s98, %s114
    %p116 = scmp.eq.s32.totalorder %s17, 0
    %p117 = por %p115, %p116
    %s118 = ssub.s32 %s11, %s18
    %p119 = scmp.eq.s32.totalorder %s118, 0
    %s121 = sadd.s32 %s120, 1
    %s122 = scalar_select %p119, %s120, %s121
    %p125 = pneg %p119
    %p126 = scmp.eq.s32.totalorder %s11, 1
    %p127 = por %p125, %p126
    %p128 = scmp.ne.s32.totalorder %s120, %s123
    %p129 = scmp.eq.s32.totalorder %s11, 0
    %p130 = por %p128, %p129
    %p131 = scmp.ne.s32.totalorder %s120, %s123
    %p132 = scmp.eq.s32.totalorder %s16, 1
    %p133 = por %p131, %p132
    %p134 = scmp.ne.s32.totalorder %s123, %s124
    %p135 = scmp.eq.s32.totalorder %s16, 0
    %p136 = por %p134, %p135
    %p137 = scmp.ne.s32.totalorder %s123, %s124
    %p138 = scmp.eq.s32.totalorder %s17, 1
    %p139 = por %p137, %p138
    %p141 = scmp.ne.s32.totalorder %s124, %s140
    %p142 = scmp.eq.s32.totalorder %s17, 0
    %p143 = por %p141, %p142
    %p144 = scmp.le.s32.totalorder 1, %s11
    %p145 = scmp.lt.s32.totalorder %s11, 3
    %p146 = pnand %p144, %p145
    %p147 = pneg %p146
    // Predicated region
    $region9: #{restnet_down_block.4} parent=5 // pred_check
      _
    $region10: #{restnet_down_block.4} parent=5 // pred_check_branch
      %149 = sbr.rel (%p146) target = $region12
    $region11: #{restnet_down_block.4} parent=5 // pred_region
      %s150 = ssub.s32 %s11, 1
      // Predicated region
      $region13: #{restnet_down_block.4} parent=11 // pred_check
        %p151 = pneg %p58
      $region14: #{restnet_down_block.4} parent=11 // pred_check_branch
        %153 = sbr.rel (%p151) target = $region16
      $region15: #{restnet_down_block.4} parent=11 // pred_region
        _
      $region16: #{restnet_down_block.4} parent=11 // pred_fallthru
        _
    $region12: #{restnet_down_block.4} parent=5 // pred_fallthru
      _
    %p154 = scmp.lt.s32.totalorder %s11, 2
    // Predicated region
    $region17: #{restnet_down_block.4} parent=5 // pred_check
      %p155 = pneg %p154
    $region18: #{restnet_down_block.4} parent=5 // pred_check_branch
      %157 = sbr.rel (%p155) target = $region20
    $region19: #{restnet_down_block.4} parent=5 // pred_region
      // Predicated region
      $region21: #{restnet_down_block.4} parent=19 // pred_check
        %p158 = pneg %p31
      $region22: #{restnet_down_block.4} parent=19 // pred_check_branch
        %160 = sbr.rel (%p158) target = $region24
      $region23: #{restnet_down_block.4} parent=19 // pred_region
        %s161 = smul.u32 8, %s11
        %p162 = scmp.lt.s32.totalorder %s161, 15
        %s163 = scalar_select %p162, %s161, 15
        %s164 = smul.addr %s163, 4
        %s165 = scalar_lea.vmem %s0, %s164
        %s166 = smul.u32 8, %s11
      $region24: #{restnet_down_block.4} parent=19 // pred_fallthru
        _
    $region20: #{restnet_down_block.4} parent=5 // pred_fallthru
      _
    %p167 = scmp.le.s32.totalorder 1, %s11
    %p168 = scmp.lt.s32.totalorder %s11, 3
    %p169 = pnand %p167, %p168
    %p170 = pneg %p169
    // Predicated region
    $region25: #{restnet_down_block.4} parent=5 // pred_check
      _
    $region26: #{restnet_down_block.4} parent=5 // pred_check_branch
      %172 = sbr.rel (%p169) target = $region28
    $region27: #{restnet_down_block.4} parent=5 // pred_region
      %s173 = ssub.s32 %s11, 1
      %s174 = smul.u32 8, %s16
      %p175 = scmp.lt.s32.totalorder %s174, 15
      %s176 = scalar_select %p175, %s174, 15
      %s177 = smul.addr %s176, 4
      %s178 = scalar_lea.vmem %s0, %s177
      %p179 = pneg %p37
      %p180 = pneg %p34
      %p181 = pneg %p58
      %p182 = pneg %p55
      %p183 = pneg %p84
      %p184 = pneg %p81
      %s185 = smul.u32 8, %s16
      %p186 = scmp.lt.s32.totalorder %s185, 15
      %s187 = scalar_select %p186, %s185, 15
      %s188 = smul.addr %s187, 4
      %s189 = scalar_lea.vmem %s2, %s188
      %p190 = pneg %p110
      %p191 = pneg %p107
      %s192 = smul.u32 8, %s16
      %p193 = scmp.lt.s32.totalorder %s192, 15
      %s194 = scalar_select %p193, %s192, 15
      %s195 = smul.addr %s194, 4
      %s196 = scalar_lea.vmem %s3, %s195
      %p197 = pneg %p136
      %p198 = pneg %p133
      %p199 = scmp.lt.s32.totalorder %s16, 1
      %s200 = scalar_select %p199, %s16, 1
      %s201 = smul.addr %s200, 4
      %s202 = scalar_lea.vmem %s4, %s201
      %s203 = smul.u32 8, %s16
      %p204 = scmp.lt.s32.totalorder %s203, 15
      %s205 = scalar_select %p204, %s203, 15
      %s206 = smul.addr %s205, 4
      %s207 = scalar_lea.vmem %s0, %s206
      %s208 = smul.u32 8, %s16
      %s209 = smul.u32 8, %s16
      %p210 = scmp.lt.s32.totalorder %s209, 15
      %s211 = scalar_select %p210, %s209, 15
      %s212 = smul.addr %s211, 4
      %s213 = scalar_lea.vmem %s2, %s212
      %s214 = smul.u32 8, %s16
      %s215 = smul.u32 8, %s16
      %p216 = scmp.lt.s32.totalorder %s215, 15
      %s217 = scalar_select %p216, %s215, 15
      %s218 = smul.addr %s217, 4
      %s219 = scalar_lea.vmem %s3, %s218
      %s220 = smul.u32 8, %s16
      %p221 = scmp.lt.s32.totalorder %s16, 1
      %s222 = scalar_select %p221, %s16, 1
      %s223 = smul.addr %s222, 4
      %s224 = scalar_lea.vmem %s4, %s223
      %v225 = vld [vmem:[%s207] sm:$0xf]
      %v226 = vld [vmem:[%s207 + $0x4] sm:$0xf]
      %v227 = vld [vmem:[%s207 + $0x8] sm:$0xf]
      %v228 = vld [vmem:[%s207 + $0xc] sm:$0xf]
      %v229 = vld [vmem:[%s207 + $0x10] sm:$0xf]
      %v230 = vld [vmem:[%s207 + $0x14] sm:$0xf]
      %v231 = vld [vmem:[%s207 + $0x18] sm:$0xf]
      %v232 = vld [vmem:[%s207 + $0x1c] sm:$0xf]
      %v233 = vld [vmem:[%s1] sm:$0xff]
      %v234 = vld [vmem:[%s1 + $0x8] sm:$0xff]
      %v235 = vld [vmem:[%s1 + $0x10] sm:$0xff]
      %v236 = vld [vmem:[%s1 + $0x18] sm:$0xff]
      %v237 = vld [vmem:[%s1 + $0x20] sm:$0xff]
      %v238 = vld [vmem:[%s1 + $0x28] sm:$0xff]
      %v239 = vld [vmem:[%s1 + $0x30] sm:$0xff]
      %v240 = vld [vmem:[%s1 + $0x38] sm:$0xff]
      %v241 = vld [vmem:[%s1 + $0x40] sm:$0xff]
      %v242 = vld [vmem:[%s1 + $0x48] sm:$0xff]
      %v243 = vld [vmem:[%s1 + $0x50] sm:$0xff]
      %v244 = vld [vmem:[%s1 + $0x58] sm:$0xff]
      %v245 = vld [vmem:[%s1 + $0x60] sm:$0xff]
      %v246 = vld [vmem:[%s1 + $0x68] sm:$0xff]
      %v247 = vld [vmem:[%s1 + $0x70] sm:$0xff]
      %v248 = vld [vmem:[%s1 + $0x78] sm:$0xff]
      %v257 = vunpack.c.l.b16 %v225
      %v258 = vunpack.c.l.b16 %v226
      %v259 = vunpack.c.l.b16 %v227
      %v260 = vunpack.c.l.b16 %v228
      %v261 = vunpack.c.l.b16 %v229
      %v262 = vunpack.c.l.b16 %v230
      %v263 = vunpack.c.l.b16 %v231
      %v264 = vunpack.c.l.b16 %v232
      %v265 = vpack.c.b16 %v258, %v257
      %v266 = vpack.c.b16 %v260, %v259
      %v267 = vpack.c.b16 %v262, %v261
      %v268 = vpack.c.b16 %v264, %v263
      %v289 = vunpack.c.l.b16 %v233
      %v290 = vunpack.c.h.b16 %v233
      %v291 = vunpack.c.l.b16 %v234
      %v292 = vunpack.c.h.b16 %v234
      %v293 = vunpack.c.l.b16 %v235
      %v294 = vunpack.c.h.b16 %v235
      %v295 = vunpack.c.l.b16 %v236
      %v296 = vunpack.c.h.b16 %v236
      %v297 = vunpack.c.l.b16 %v237
      %v298 = vunpack.c.h.b16 %v237
      %v299 = vunpack.c.l.b16 %v238
      %v300 = vunpack.c.h.b16 %v238
      %v301 = vunpack.c.l.b16 %v239
      %v302 = vunpack.c.h.b16 %v239
      %v303 = vunpack.c.l.b16 %v240
      %v304 = vunpack.c.h.b16 %v240
      %v305 = vunpack.c.l.b16 %v241
      %v306 = vunpack.c.h.b16 %v241
      %v307 = vunpack.c.l.b16 %v242
      %v308 = vunpack.c.h.b16 %v242
      %v309 = vunpack.c.l.b16 %v243
      %v310 = vunpack.c.h.b16 %v243
      %v311 = vunpack.c.l.b16 %v244
      %v312 = vunpack.c.h.b16 %v244
      %v313 = vunpack.c.l.b16 %v245
      %v314 = vunpack.c.h.b16 %v245
      %v315 = vunpack.c.l.b16 %v246
      %v316 = vunpack.c.h.b16 %v246
      %v317 = vunpack.c.l.b16 %v247
      %v318 = vunpack.c.h.b16 %v247
      %v319 = vunpack.c.l.b16 %v248
      %v320 = vunpack.c.h.b16 %v248
      %v321 = vpack.c.b16 %v291, %v289
      %v322 = vpack.c.b16 %v292, %v290
      %v323 = vpack.c.b16 %v295, %v293
      %v324 = vpack.c.b16 %v296, %v294
      %v325 = vpack.c.b16 %v299, %v297
      %v326 = vpack.c.b16 %v300, %v298
      %v327 = vpack.c.b16 %v303, %v301
      %v328 = vpack.c.b16 %v304, %v302
      %v329 = vpack.c.b16 %v307, %v305
      %v330 = vpack.c.b16 %v308, %v306
      %v331 = vpack.c.b16 %v311, %v309
      %v332 = vpack.c.b16 %v312, %v310
      %v333 = vpack.c.b16 %v315, %v313
      %v334 = vpack.c.b16 %v316, %v314
      %v335 = vpack.c.b16 %v319, %v317
      %v336 = vpack.c.b16 %v320, %v318
      %353 = vmatpush.bf16.msra.mxu0 %v335
      %354 = vmatpush.bf16.msra.mxu0 %v333
      %355 = vmatpush.bf16.msra.mxu0 %v331
      %356 = vmatpush.bf16.msra.mxu0 %v329
      %357 = vmatpush.bf16.msra.mxu0 %v327
      %358 = vmatpush.bf16.msra.mxu0 %v325
      %359 = vmatpush.bf16.msra.mxu0 %v323
      %360 = vmatpush.bf16.msra.mxu0 %v321
      %361 = vmatmul.bf16.gmra.mxu0 %v265
      %v362 = vpop.f32.mrf.mxu0
      %v363 = vadd.f32 0.0, %v362
      %v364 = vpop.f32.mrf.mxu0
      %v365 = vadd.f32 0.0, %v364
      %366 = vmatmul.bf16.gmra.mxu0 %v266
      %v367 = vpop.f32.mrf.mxu0
      %v368 = vadd.f32 0.0, %v367
      %v369 = vpop.f32.mrf.mxu0
      %v370 = vadd.f32 0.0, %v369
      %371 = vmatmul.bf16.gmra.mxu0 %v267
      %v372 = vpop.f32.mrf.mxu0
      %v373 = vadd.f32 0.0, %v372
      %v374 = vpop.f32.mrf.mxu0
      %v375 = vadd.f32 0.0, %v374
      %376 = vmatmul.bf16.gmra.mxu0 %v268
      %v377 = vpop.f32.mrf.mxu0
      %v378 = vadd.f32 0.0, %v377
      %v379 = vpop.f32.mrf.mxu0
      %v380 = vadd.f32 0.0, %v379
      %381 = vdwg.mxu0
      %382 = vmatpush.bf16.msra.mxu0 %v336
      %383 = vmatpush.bf16.msra.mxu0 %v334
      %384 = vmatpush.bf16.msra.mxu0 %v332
      %385 = vmatpush.bf16.msra.mxu0 %v330
      %386 = vmatpush.bf16.msra.mxu0 %v328
      %387 = vmatpush.bf16.msra.mxu0 %v326
      %388 = vmatpush.bf16.msra.mxu0 %v324
      %389 = vmatpush.bf16.msra.mxu0 %v322
      %390 = vmatmul.bf16.gmra.mxu0 %v265
      %v391 = vpop.f32.mrf.mxu0
      %v392 = vadd.f32 0.0, %v391
      %v393 = vpop.f32.mrf.mxu0
      %v394 = vadd.f32 0.0, %v393
      %395 = vmatmul.bf16.gmra.mxu0 %v266
      %v396 = vpop.f32.mrf.mxu0
      %v397 = vadd.f32 0.0, %v396
      %v398 = vpop.f32.mrf.mxu0
      %v399 = vadd.f32 0.0, %v398
      %400 = vmatmul.bf16.gmra.mxu0 %v267
      %v401 = vpop.f32.mrf.mxu0
      %v402 = vadd.f32 0.0, %v401
      %v403 = vpop.f32.mrf.mxu0
      %v404 = vadd.f32 0.0, %v403
      %405 = vmatmul.bf16.gmra.mxu0 %v268
      %v406 = vpop.f32.mrf.mxu0
      %v407 = vadd.f32 0.0, %v406
      %v408 = vpop.f32.mrf.mxu0
      %v409 = vadd.f32 0.0, %v408
      %410 = vdwg.mxu0
      %v411 = vpack.c.bf16 %v363, %v363
      %v412 = vpack.c.bf16 %v365, %v365
      %v413 = vpack.c.bf16 %v368, %v368
      %v414 = vpack.c.bf16 %v370, %v370
      %v415 = vpack.c.bf16 %v373, %v373
      %v416 = vpack.c.bf16 %v375, %v375
      %v417 = vpack.c.bf16 %v378, %v378
      %v418 = vpack.c.bf16 %v380, %v380
      %419 = vst [vmem:[%s213] sm:$0xf] %v411
      %420 = vst [vmem:[%s213 + $0x4] sm:$0xf] %v412
      %421 = vst [vmem:[%s213 + $0x8] sm:$0xf] %v413
      %422 = vst [vmem:[%s213 + $0xc] sm:$0xf] %v414
      %423 = vst [vmem:[%s213 + $0x10] sm:$0xf] %v415
      %424 = vst [vmem:[%s213 + $0x14] sm:$0xf] %v416
      %425 = vst [vmem:[%s213 + $0x18] sm:$0xf] %v417
      %426 = vst [vmem:[%s213 + $0x1c] sm:$0xf] %v418
      %v427 = vpack.c.bf16 %v392, %v392
      %v428 = vpack.c.bf16 %v394, %v394
      %v429 = vpack.c.bf16 %v397, %v397
      %v430 = vpack.c.bf16 %v399, %v399
      %v431 = vpack.c.bf16 %v402, %v402
      %v432 = vpack.c.bf16 %v404, %v404
      %v433 = vpack.c.bf16 %v407, %v407
      %v434 = vpack.c.bf16 %v409, %v409
      %435 = vst [vmem:[%s219] sm:$0xf] %v427
      %436 = vst [vmem:[%s219 + $0x4] sm:$0xf] %v428
      %437 = vst [vmem:[%s219 + $0x8] sm:$0xf] %v429
      %438 = vst [vmem:[%s219 + $0xc] sm:$0xf] %v430
      %439 = vst [vmem:[%s219 + $0x10] sm:$0xf] %v431
      %440 = vst [vmem:[%s219 + $0x14] sm:$0xf] %v432
      %441 = vst [vmem:[%s219 + $0x18] sm:$0xf] %v433
      %442 = vst [vmem:[%s219 + $0x1c] sm:$0xf] %v434
      %v443 = vadd.f32 %v363, %v365
      %v444 = vadd.f32 %v443, %v368
      %v445 = vadd.f32 %v444, %v370
      %v446 = vadd.f32 %v445, %v373
      %v447 = vadd.f32 %v446, %v375
      %v448 = vadd.f32 %v447, %v378
      %v449 = vadd.f32 %v448, %v380
      %v450 = vrot.slane %v449, 4
      %v451 = vadd.f32 %v449, %v450
      %v452 = vrot.slane %v451, 2
      %v453 = vadd.f32 %v451, %v452
      %v454 = vrot.slane %v453, 1
      %v455 = vadd.f32 %v453, %v454
      %v456 = vmul.f32 %v363, %v363
      %v457 = vmul.f32 %v365, %v365
      %v458 = vmul.f32 %v368, %v368
      %v459 = vmul.f32 %v370, %v370
      %v460 = vmul.f32 %v373, %v373
      %v461 = vmul.f32 %v375, %v375
      %v462 = vmul.f32 %v378, %v378
      %v463 = vmul.f32 %v380, %v380
      %v464 = vadd.f32 %v456, %v457
      %v465 = vadd.f32 %v464, %v458
      %v466 = vadd.f32 %v465, %v459
      %v467 = vadd.f32 %v466, %v460
      %v468 = vadd.f32 %v467, %v461
      %v469 = vadd.f32 %v468, %v462
      %v470 = vadd.f32 %v469, %v463
      %v471 = vrot.slane %v470, 4
      %v472 = vadd.f32 %v470, %v471
      %v473 = vrot.slane %v472, 2
      %v474 = vadd.f32 %v472, %v473
      %v475 = vrot.slane %v474, 1
      %v476 = vadd.f32 %v474, %v475
      %v477 = vadd.f32 %v392, %v394
      %v478 = vadd.f32 %v477, %v397
      %v479 = vadd.f32 %v478, %v399
      %v480 = vadd.f32 %v479, %v402
      %v481 = vadd.f32 %v480, %v404
      %v482 = vadd.f32 %v481, %v407
      %v483 = vadd.f32 %v482, %v409
      %v484 = vrot.slane %v483, 4
      %v485 = vadd.f32 %v483, %v484
      %v486 = vrot.slane %v485, 2
      %v487 = vadd.f32 %v485, %v486
      %v488 = vrot.slane %v487, 1
      %v489 = vadd.f32 %v487, %v488
      %v490 = vmul.f32 %v392, %v392
      %v491 = vmul.f32 %v394, %v394
      %v492 = vmul.f32 %v397, %v397
      %v493 = vmul.f32 %v399, %v399
      %v494 = vmul.f32 %v402, %v402
      %v495 = vmul.f32 %v404, %v404
      %v496 = vmul.f32 %v407, %v407
      %v497 = vmul.f32 %v409, %v409
      %v498 = vadd.f32 %v490, %v491
      %v499 = vadd.f32 %v498, %v492
      %v500 = vadd.f32 %v499, %v493
      %v501 = vadd.f32 %v500, %v494
      %v502 = vadd.f32 %v501, %v495
      %v503 = vadd.f32 %v502, %v496
      %v504 = vadd.f32 %v503, %v497
      %v505 = vrot.slane %v504, 4
      %v506 = vadd.f32 %v504, %v505
      %v507 = vrot.slane %v506, 2
      %v508 = vadd.f32 %v506, %v507
      %v509 = vrot.slane %v508, 1
      %v510 = vadd.f32 %v508, %v509
      %vm511 = vcmask 1040384
      %v512 = vsel %vm511, %v455, %v476
      %vm513 = vcmask 1041408
      %v514 = vsel %vm513, %v512, %v489
      %vm515 = vcmask 1042432
      %v516 = vsel %vm515, %v514, %v510
      %517 = vst [vmem:[%s224] sm:$0xf] %v516
      %s518 = smul.u32 8, %s16
      %p519 = scmp.lt.s32.totalorder %s518, 15
      %s520 = scalar_select %p519, %s518, 15
      %s521 = smul.addr %s520, 4
      %s522 = scalar_lea.vmem %s2, %s521
      %s523 = smul.u32 8, %s16
      %p524 = scmp.lt.s32.totalorder %s523, 15
      %s525 = scalar_select %p524, %s523, 15
      %s526 = smul.addr %s525, 4
      %s527 = scalar_lea.vmem %s3, %s526
      %p528 = scmp.lt.s32.totalorder %s16, 1
      %s529 = scalar_select %p528, %s16, 1
      %s530 = smul.addr %s529, 4
      %s531 = scalar_lea.vmem %s4, %s530
      // Predicated region
      $region29: #{restnet_down_block.4} parent=27 // pred_check
        %p532 = pneg %p81
      $region30: #{restnet_down_block.4} parent=27 // pred_check_branch
        %534 = sbr.rel (%p532) target = $region32
      $region31: #{restnet_down_block.4} parent=27 // pred_region
        %s535 = smul.u32 8, %s16
      $region32: #{restnet_down_block.4} parent=27 // pred_fallthru
        _
      // Predicated region
      $region33: #{restnet_down_block.4} parent=27 // pred_check
        %p536 = pneg %p107
      $region34: #{restnet_down_block.4} parent=27 // pred_check_branch
        %538 = sbr.rel (%p536) target = $region36
      $region35: #{restnet_down_block.4} parent=27 // pred_region
        %s539 = smul.u32 8, %s16
      $region36: #{restnet_down_block.4} parent=27 // pred_fallthru
        _
      // Predicated region
      $region37: #{restnet_down_block.4} parent=27 // pred_check
        %p540 = pneg %p133
      $region38: #{restnet_down_block.4} parent=27 // pred_check_branch
        %542 = sbr.rel (%p540) target = $region40
      $region39: #{restnet_down_block.4} parent=27 // pred_region
        _
      $region40: #{restnet_down_block.4} parent=27 // pred_fallthru
        _
    $region28: #{restnet_down_block.4} parent=5 // pred_fallthru
      _
    %p543 = scmp.le.s32.totalorder 2, %s11
    // Predicated region
    $region41: #{restnet_down_block.4} parent=5 // pred_check
      %p544 = pneg %p543
    $region42: #{restnet_down_block.4} parent=5 // pred_check_branch
      %546 = sbr.rel (%p544) target = $region44
    $region43: #{restnet_down_block.4} parent=5 // pred_region
      %s547 = ssub.s32 %s11, 2
      // Predicated region
      $region45: #{restnet_down_block.4} parent=43 // pred_check
        %p548 = pneg %p87
      $region46: #{restnet_down_block.4} parent=43 // pred_check_branch
        %550 = sbr.rel (%p548) target = $region48
      $region47: #{restnet_down_block.4} parent=43 // pred_region
        %s551 = smul.u32 8, %s17
        %p552 = scmp.lt.s32.totalorder %s551, 15
        %s553 = scalar_select %p552, %s551, 15
        %s554 = smul.addr %s553, 4
        %s555 = scalar_lea.vmem %s2, %s554
      $region48: #{restnet_down_block.4} parent=43 // pred_fallthru
        _
      // Predicated region
      $region49: #{restnet_down_block.4} parent=43 // pred_check
        %p556 = pneg %p113
      $region50: #{restnet_down_block.4} parent=43 // pred_check_branch
        %558 = sbr.rel (%p556) target = $region52
      $region51: #{restnet_down_block.4} parent=43 // pred_region
        %s559 = smul.u32 8, %s17
        %p560 = scmp.lt.s32.totalorder %s559, 15
        %s561 = scalar_select %p560, %s559, 15
        %s562 = smul.addr %s561, 4
        %s563 = scalar_lea.vmem %s3, %s562
      $region52: #{restnet_down_block.4} parent=43 // pred_fallthru
        _
      // Predicated region
      $region53: #{restnet_down_block.4} parent=43 // pred_check
        %p564 = pneg %p139
      $region54: #{restnet_down_block.4} parent=43 // pred_check_branch
        %566 = sbr.rel (%p564) target = $region56
      $region55: #{restnet_down_block.4} parent=43 // pred_region
        %p567 = scmp.lt.s32.totalorder %s17, 1
        %s568 = scalar_select %p567, %s17, 1
        %s569 = smul.addr %s568, 4
        %s570 = scalar_lea.vmem %s4, %s569
      $region56: #{restnet_down_block.4} parent=43 // pred_fallthru
        _
    $region44: #{restnet_down_block.4} parent=5 // pred_fallthru
      _
  $region6: #{restnet_down_block.4} parent=0 // loop_footer
    %s15 = sadd.s32 1, %s11
  $region7: #{restnet_down_block.4} parent=0 // loop_footer_branch
    %10 = sbr.rel target = $region3
  $region8: #{restnet_down_block.4} parent=0 // loop_exit
    _

// kernel: restnet_down_block.6
$region0: #{restnet_down_block.6}
  #allocation0 [shape = 'u32[]', space=smem, size = 0x4, offset = 0x4, fixed_abs, tag = 'smem constant byte address 0x4 - core index']
  #allocation1 [shape = 'u32[72,128]{1,0:T(1,128)}', space=vmem, size = 0x9000, scoped, tag = 'internal scratch']
  %s0 = inlined_call_operand.vmem [shape: bf16[128,128], index: 0, kind: input, shape index: {}]
  %s1 = inlined_call_operand.vmem [shape: bf16[128,128], index: 1, kind: input, shape index: {}]
  %s2 = inlined_call_operand.vmem [shape: bf16[128,128], index: 2, kind: output, shape index: {0}]
  %s3 = inlined_call_operand.vmem [shape: f32[2,2,128], index: 3, kind: output, shape index: {1}]
  %4 = xla_tuple %s2, %s3
  %s5 = sld [smem:[#allocation0]]
  $region49: #{restnet_down_block.6} parent=0
    _
  %s7 = ssub.s32 1, %s5
  %s8 = scalar_select 0, %s7, %s5
  loop: start=0, step=1, limit=4
  $region2: #{restnet_down_block.6} parent=0 // loop_pre_header
    _
  $region3: #{restnet_down_block.6} parent=0 // loop_header
    %s10 = sphi 0, %s14
    %p11 = scmp.ge.s32.totalorder %s10, 4
    %s20 = sphi 0, %s22
    %s23 = sphi 0, %s20
    %s24 = sphi 0, %s23
    %s40 = sphi 0, %s24
    %s44 = sphi 0, %s44
    %s46 = sphi 0, %s44
    %s47 = sphi 0, %s46
    %s61 = sphi 0, %s47
    %s67 = sphi 0, %s69
    %s70 = sphi 0, %s67
    %s71 = sphi 0, %s70
    %s87 = sphi 0, %s71
    %s93 = sphi 0, %s95
    %s96 = sphi 0, %s93
    %s97 = sphi 0, %s96
    %s113 = sphi 0, %s97
  $region4: #{restnet_down_block.6} parent=0 // loop_header_branch
    %13 = sbr.rel (%p11) target = $region8
  $region5: #{restnet_down_block.6} parent=0 // loop_body
    %s15 = ssub.s32 %s10, 1
    %s16 = ssub.s32 %s10, 2
    %s17 = sadd.s32 %s10, 1
    %s18 = ssub.s32 %s10, %s17
    %p19 = scmp.eq.s32.totalorder %s18, 0
    %s21 = sadd.s32 %s20, 1
    %s22 = scalar_select %p19, %s20, %s21
    %p25 = pneg %p19
    %p26 = scmp.eq.s32.totalorder %s10, 1
    %p27 = por %p25, %p26
    %p28 = scmp.ne.s32.totalorder %s20, %s23
    %p29 = scmp.eq.s32.totalorder %s10, 0
    %p30 = por %p28, %p29
    %p31 = scmp.ne.s32.totalorder %s20, %s23
    %p32 = scmp.eq.s32.totalorder %s15, 1
    %p33 = por %p31, %p32
    %p34 = scmp.ne.s32.totalorder %s23, %s24
    %p35 = scmp.eq.s32.totalorder %s15, 0
    %p36 = por %p34, %p35
    %p37 = scmp.ne.s32.totalorder %s23, %s24
    %p38 = scmp.eq.s32.totalorder %s16, 1
    %p39 = por %p37, %p38
    %p41 = scmp.ne.s32.totalorder %s24, %s40
    %p42 = scmp.eq.s32.totalorder %s16, 0
    %p43 = por %p41, %p42
    %s45 = sadd.s32 %s44, 1
    %p48 = scmp.eq.s32.totalorder %s10, 1
    %p49 = scmp.ne.s32.totalorder %s44, %s46
    %p50 = scmp.eq.s32.totalorder %s10, 0
    %p51 = por %p49, %p50
    %p52 = scmp.ne.s32.totalorder %s44, %s46
    %p53 = scmp.eq.s32.totalorder %s15, 1
    %p54 = por %p52, %p53
    %p55 = scmp.ne.s32.totalorder %s46, %s47
    %p56 = scmp.eq.s32.totalorder %s15, 0
    %p57 = por %p55, %p56
    %p58 = scmp.ne.s32.totalorder %s46, %s47
    %p59 = scmp.eq.s32.totalorder %s16, 1
    %p60 = por %p58, %p59
    %p62 = scmp.ne.s32.totalorder %s47, %s61
    %p63 = scmp.eq.s32.totalorder %s16, 0
    %p64 = por %p62, %p63
    %s65 = ssub.s32 %s10, %s17
    %p66 = scmp.eq.s32.totalorder %s65, 0
    %s68 = sadd.s32 %s67, 1
    %s69 = scalar_select %p66, %s67, %s68
    %p72 = pneg %p66
    %p73 = scmp.eq.s32.totalorder %s10, 1
    %p74 = por %p72, %p73
    %p75 = scmp.ne.s32.totalorder %s67, %s70
    %p76 = scmp.eq.s32.totalorder %s10, 0
    %p77 = por %p75, %p76
    %p78 = scmp.ne.s32.totalorder %s67, %s70
    %p79 = scmp.eq.s32.totalorder %s15, 1
    %p80 = por %p78, %p79
    %p81 = scmp.ne.s32.totalorder %s70, %s71
    %p82 = scmp.eq.s32.totalorder %s15, 0
    %p83 = por %p81, %p82
    %p84 = scmp.ne.s32.totalorder %s70, %s71
    %p85 = scmp.eq.s32.totalorder %s16, 1
    %p86 = por %p84, %p85
    %p88 = scmp.ne.s32.totalorder %s71, %s87
    %p89 = scmp.eq.s32.totalorder %s16, 0
    %p90 = por %p88, %p89
    %s91 = ssub.s32 %s10, %s17
    %p92 = scmp.eq.s32.totalorder %s91, 0
    %s94 = sadd.s32 %s93, 1
    %s95 = scalar_select %p92, %s93, %s94
    %p98 = pneg %p92
    %p99 = scmp.eq.s32.totalorder %s10, 1
    %p100 = por %p98, %p99
    %p101 = scmp.ne.s32.totalorder %s93, %s96
    %p102 = scmp.eq.s32.totalorder %s10, 0
    %p103 = por %p101, %p102
    %p104 = scmp.ne.s32.totalorder %s93, %s96
    %p105 = scmp.eq.s32.totalorder %s15, 1
    %p106 = por %p104, %p105
    %p107 = scmp.ne.s32.totalorder %s96, %s97
    %p108 = scmp.eq.s32.totalorder %s15, 0
    %p109 = por %p107, %p108
    %p110 = scmp.ne.s32.totalorder %s96, %s97
    %p111 = scmp.eq.s32.totalorder %s16, 1
    %p112 = por %p110, %p111
    %p114 = scmp.ne.s32.totalorder %s97, %s113
    %p115 = scmp.eq.s32.totalorder %s16, 0
    %p116 = por %p114, %p115
    %p117 = scmp.le.s32.totalorder 1, %s10
    %p118 = scmp.lt.s32.totalorder %s10, 3
    %p119 = pnand %p117, %p118
    %p120 = pneg %p119
    // Predicated region
    $region9: #{restnet_down_block.6} parent=5 // pred_check
      _
    $region10: #{restnet_down_block.6} parent=5 // pred_check_branch
      %122 = sbr.rel (%p119) target = $region12
    $region11: #{restnet_down_block.6} parent=5 // pred_region
      %s123 = ssub.s32 %s10, 1
      // Predicated region
      $region13: #{restnet_down_block.6} parent=11 // pred_check
        %p124 = pneg %p57
      $region14: #{restnet_down_block.6} parent=11 // pred_check_branch
        %126 = sbr.rel (%p124) target = $region16
      $region15: #{restnet_down_block.6} parent=11 // pred_region
        _
      $region16: #{restnet_down_block.6} parent=11 // pred_fallthru
        _
    $region12: #{restnet_down_block.6} parent=5 // pred_fallthru
      _
    %p127 = scmp.lt.s32.totalorder %s10, 2
    // Predicated region
    $region17: #{restnet_down_block.6} parent=5 // pred_check
      %p128 = pneg %p127
    $region18: #{restnet_down_block.6} parent=5 // pred_check_branch
      %130 = sbr.rel (%p128) target = $region20
    $region19: #{restnet_down_block.6} parent=5 // pred_region
      // Predicated region
      $region21: #{restnet_down_block.6} parent=19 // pred_check
        %p131 = pneg %p30
      $region22: #{restnet_down_block.6} parent=19 // pred_check_branch
        %133 = sbr.rel (%p131) target = $region24
      $region23: #{restnet_down_block.6} parent=19 // pred_region
        %s134 = smul.u32 8, %s10
        %p135 = scmp.lt.s32.totalorder %s134, 15
        %s136 = scalar_select %p135, %s134, 15
        %s137 = smul.addr %s136, 4
        %s138 = scalar_lea.vmem %s0, %s137
        %s139 = smul.u32 8, %s10
      $region24: #{restnet_down_block.6} parent=19 // pred_fallthru
        _
    $region20: #{restnet_down_block.6} parent=5 // pred_fallthru
      _
    %p140 = scmp.le.s32.totalorder 1, %s10
    %p141 = scmp.lt.s32.totalorder %s10, 3
    %p142 = pnand %p140, %p141
    %p143 = pneg %p142
    // Predicated region
    $region25: #{restnet_down_block.6} parent=5 // pred_check
      _
    $region26: #{restnet_down_block.6} parent=5 // pred_check_branch
      %145 = sbr.rel (%p142) target = $region28
    $region27: #{restnet_down_block.6} parent=5 // pred_region
      %s146 = ssub.s32 %s10, 1
      %s147 = smul.u32 8, %s15
      %p148 = scmp.lt.s32.totalorder %s147, 15
      %s149 = scalar_select %p148, %s147, 15
      %s150 = smul.addr %s149, 4
      %s151 = scalar_lea.vmem %s0, %s150
      %p152 = pneg %p36
      %p153 = pneg %p33
      %p154 = pneg %p57
      %p155 = pneg %p54
      %p156 = pneg %p83
      %p157 = pneg %p80
      %s158 = smul.u32 8, %s15
      %p159 = scmp.lt.s32.totalorder %s158, 15
      %s160 = scalar_select %p159, %s158, 15
      %s161 = smul.addr %s160, 4
      %s162 = scalar_lea.vmem %s2, %s161
      %p163 = pneg %p109
      %p164 = pneg %p106
      %p165 = scmp.lt.s32.totalorder %s15, 1
      %s166 = scalar_select %p165, %s15, 1
      %s167 = smul.addr %s166, 2
      %s168 = scalar_lea.vmem %s3, %s167
      %s169 = smul.u32 8, %s15
      %p170 = scmp.lt.s32.totalorder %s169, 15
      %s171 = scalar_select %p170, %s169, 15
      %s172 = smul.addr %s171, 4
      %s173 = scalar_lea.vmem %s0, %s172
      %s174 = smul.u32 8, %s15
      %s175 = smul.u32 8, %s15
      %p176 = scmp.lt.s32.totalorder %s175, 15
      %s177 = scalar_select %p176, %s175, 15
      %s178 = smul.addr %s177, 4
      %s179 = scalar_lea.vmem %s2, %s178
      %s180 = smul.u32 8, %s15
      %p181 = scmp.lt.s32.totalorder %s15, 1
      %s182 = scalar_select %p181, %s15, 1
      %s183 = smul.addr %s182, 2
      %s184 = scalar_lea.vmem %s3, %s183
      %v185 = vld [vmem:[%s173] sm:$0xf]
      %v186 = vld [vmem:[%s173 + $0x4] sm:$0xf]
      %v187 = vld [vmem:[%s173 + $0x8] sm:$0xf]
      %v188 = vld [vmem:[%s173 + $0xc] sm:$0xf]
      %v189 = vld [vmem:[%s173 + $0x10] sm:$0xf]
      %v190 = vld [vmem:[%s173 + $0x14] sm:$0xf]
      %v191 = vld [vmem:[%s173 + $0x18] sm:$0xf]
      %v192 = vld [vmem:[%s173 + $0x1c] sm:$0xf]
      %v193 = vld [vmem:[%s1] sm:$0xf]
      %v194 = vld [vmem:[%s1 + $0x4] sm:$0xf]
      %v195 = vld [vmem:[%s1 + $0x8] sm:$0xf]
      %v196 = vld [vmem:[%s1 + $0xc] sm:$0xf]
      %v197 = vld [vmem:[%s1 + $0x10] sm:$0xf]
      %v198 = vld [vmem:[%s1 + $0x14] sm:$0xf]
      %v199 = vld [vmem:[%s1 + $0x18] sm:$0xf]
      %v200 = vld [vmem:[%s1 + $0x1c] sm:$0xf]
      %v201 = vld [vmem:[%s1 + $0x20] sm:$0xf]
      %v202 = vld [vmem:[%s1 + $0x24] sm:$0xf]
      %v203 = vld [vmem:[%s1 + $0x28] sm:$0xf]
      %v204 = vld [vmem:[%s1 + $0x2c] sm:$0xf]
      %v205 = vld [vmem:[%s1 + $0x30] sm:$0xf]
      %v206 = vld [vmem:[%s1 + $0x34] sm:$0xf]
      %v207 = vld [vmem:[%s1 + $0x38] sm:$0xf]
      %v208 = vld [vmem:[%s1 + $0x3c] sm:$0xf]
      %v217 = vunpack.c.l.b16 %v185
      %v218 = vunpack.c.l.b16 %v186
      %v219 = vunpack.c.l.b16 %v187
      %v220 = vunpack.c.l.b16 %v188
      %v221 = vunpack.c.l.b16 %v189
      %v222 = vunpack.c.l.b16 %v190
      %v223 = vunpack.c.l.b16 %v191
      %v224 = vunpack.c.l.b16 %v192
      %v225 = vpack.c.b16 %v218, %v217
      %v226 = vpack.c.b16 %v220, %v219
      %v227 = vpack.c.b16 %v222, %v221
      %v228 = vpack.c.b16 %v224, %v223
      %v249 = vunpack.c.l.b16 %v193
      %v250 = vunpack.c.l.b16 %v194
      %v251 = vunpack.c.l.b16 %v195
      %v252 = vunpack.c.l.b16 %v196
      %v253 = vunpack.c.l.b16 %v197
      %v254 = vunpack.c.l.b16 %v198
      %v255 = vunpack.c.l.b16 %v199
      %v256 = vunpack.c.l.b16 %v200
      %v257 = vunpack.c.l.b16 %v201
      %v258 = vunpack.c.l.b16 %v202
      %v259 = vunpack.c.l.b16 %v203
      %v260 = vunpack.c.l.b16 %v204
      %v261 = vunpack.c.l.b16 %v205
      %v262 = vunpack.c.l.b16 %v206
      %v263 = vunpack.c.l.b16 %v207
      %v264 = vunpack.c.l.b16 %v208
      %v265 = vpack.c.b16 %v250, %v249
      %v266 = vpack.c.b16 %v252, %v251
      %v267 = vpack.c.b16 %v254, %v253
      %v268 = vpack.c.b16 %v256, %v255
      %v269 = vpack.c.b16 %v258, %v257
      %v270 = vpack.c.b16 %v260, %v259
      %v271 = vpack.c.b16 %v262, %v261
      %v272 = vpack.c.b16 %v264, %v263
      %281 = vmatpush.bf16.msra.mxu0 %v272
      %282 = vmatpush.bf16.msra.mxu0 %v271
      %283 = vmatpush.bf16.msra.mxu0 %v270
      %284 = vmatpush.bf16.msra.mxu0 %v269
      %285 = vmatpush.bf16.msra.mxu0 %v268
      %286 = vmatpush.bf16.msra.mxu0 %v267
      %287 = vmatpush.bf16.msra.mxu0 %v266
      %288 = vmatpush.bf16.msra.mxu0 %v265
      %289 = vmatmul.bf16.gmra.mxu0 %v225
      %v290 = vpop.f32.mrf.mxu0
      %v291 = vadd.f32 0.0, %v290
      %v292 = vpop.f32.mrf.mxu0
      %v293 = vadd.f32 0.0, %v292
      %294 = vmatmul.bf16.gmra.mxu0 %v226
      %v295 = vpop.f32.mrf.mxu0
      %v296 = vadd.f32 0.0, %v295
      %v297 = vpop.f32.mrf.mxu0
      %v298 = vadd.f32 0.0, %v297
      %299 = vmatmul.bf16.gmra.mxu0 %v227
      %v300 = vpop.f32.mrf.mxu0
      %v301 = vadd.f32 0.0, %v300
      %v302 = vpop.f32.mrf.mxu0
      %v303 = vadd.f32 0.0, %v302
      %304 = vmatmul.bf16.gmra.mxu0 %v228
      %v305 = vpop.f32.mrf.mxu0
      %v306 = vadd.f32 0.0, %v305
      %v307 = vpop.f32.mrf.mxu0
      %v308 = vadd.f32 0.0, %v307
      %309 = vdwg.mxu0
      %v310 = vpack.c.bf16 %v291, %v291
      %v311 = vpack.c.bf16 %v293, %v293
      %v312 = vpack.c.bf16 %v296, %v296
      %v313 = vpack.c.bf16 %v298, %v298
      %v314 = vpack.c.bf16 %v301, %v301
      %v315 = vpack.c.bf16 %v303, %v303
      %v316 = vpack.c.bf16 %v306, %v306
      %v317 = vpack.c.bf16 %v308, %v308
      %318 = vst [vmem:[%s179] sm:$0xf] %v310
      %319 = vst [vmem:[%s179 + $0x4] sm:$0xf] %v311
      %320 = vst [vmem:[%s179 + $0x8] sm:$0xf] %v312
      %321 = vst [vmem:[%s179 + $0xc] sm:$0xf] %v313
      %322 = vst [vmem:[%s179 + $0x10] sm:$0xf] %v314
      %323 = vst [vmem:[%s179 + $0x14] sm:$0xf] %v315
      %324 = vst [vmem:[%s179 + $0x18] sm:$0xf] %v316
      %325 = vst [vmem:[%s179 + $0x1c] sm:$0xf] %v317
      %v326 = vadd.f32 %v291, %v293
      %v327 = vadd.f32 %v326, %v296
      %v328 = vadd.f32 %v327, %v298
      %v329 = vadd.f32 %v328, %v301
      %v330 = vadd.f32 %v329, %v303
      %v331 = vadd.f32 %v330, %v306
      %v332 = vadd.f32 %v331, %v308
      %v333 = vrot.slane %v332, 4
      %v334 = vadd.f32 %v332, %v333
      %v335 = vrot.slane %v334, 2
      %v336 = vadd.f32 %v334, %v335
      %v337 = vrot.slane %v336, 1
      %v338 = vadd.f32 %v336, %v337
      %v339 = vmul.f32 %v291, %v291
      %v340 = vmul.f32 %v293, %v293
      %v341 = vmul.f32 %v296, %v296
      %v342 = vmul.f32 %v298, %v298
      %v343 = vmul.f32 %v301, %v301
      %v344 = vmul.f32 %v303, %v303
      %v345 = vmul.f32 %v306, %v306
      %v346 = vmul.f32 %v308, %v308
      %v347 = vadd.f32 %v339, %v340
      %v348 = vadd.f32 %v347, %v341
      %v349 = vadd.f32 %v348, %v342
      %v350 = vadd.f32 %v349, %v343
      %v351 = vadd.f32 %v350, %v344
      %v352 = vadd.f32 %v351, %v345
      %v353 = vadd.f32 %v352, %v346
      %v354 = vrot.slane %v353, 4
      %v355 = vadd.f32 %v353, %v354
      %v356 = vrot.slane %v355, 2
      %v357 = vadd.f32 %v355, %v356
      %v358 = vrot.slane %v357, 1
      %v359 = vadd.f32 %v357, %v358
      %vm360 = vcmask 1040384
      %v361 = vsel %vm360, %v338, %v359
      %362 = vst [vmem:[%s184] sm:$0x3] %v361
      %s363 = smul.u32 8, %s15
      %p364 = scmp.lt.s32.totalorder %s363, 15
      %s365 = scalar_select %p364, %s363, 15
      %s366 = smul.addr %s365, 4
      %s367 = scalar_lea.vmem %s2, %s366
      %p368 = scmp.lt.s32.totalorder %s15, 1
      %s369 = scalar_select %p368, %s15, 1
      %s370 = smul.addr %s369, 2
      %s371 = scalar_lea.vmem %s3, %s370
      // Predicated region
      $region29: #{restnet_down_block.6} parent=27 // pred_check
        %p372 = pneg %p80
      $region30: #{restnet_down_block.6} parent=27 // pred_check_branch
        %374 = sbr.rel (%p372) target = $region32
      $region31: #{restnet_down_block.6} parent=27 // pred_region
        %s375 = smul.u32 8, %s15
      $region32: #{restnet_down_block.6} parent=27 // pred_fallthru
        _
      // Predicated region
      $region33: #{restnet_down_block.6} parent=27 // pred_check
        %p376 = pneg %p106
      $region34: #{restnet_down_block.6} parent=27 // pred_check_branch
        %378 = sbr.rel (%p376) target = $region36
      $region35: #{restnet_down_block.6} parent=27 // pred_region
        _
      $region36: #{restnet_down_block.6} parent=27 // pred_fallthru
        _
    $region28: #{restnet_down_block.6} parent=5 // pred_fallthru
      _
    %p379 = scmp.le.s32.totalorder 2, %s10
    // Predicated region
    $region37: #{restnet_down_block.6} parent=5 // pred_check
      %p380 = pneg %p379
    $region38: #{restnet_down_block.6} parent=5 // pred_check_branch
      %382 = sbr.rel (%p380) target = $region40
    $region39: #{restnet_down_block.6} parent=5 // pred_region
      %s383 = ssub.s32 %s10, 2
      // Predicated region
      $region41: #{restnet_down_block.6} parent=39 // pred_check
        %p384 = pneg %p86
      $region42: #{restnet_down_block.6} parent=39 // pred_check_branch
        %386 = sbr.rel (%p384) target = $region44
      $region43: #{restnet_down_block.6} parent=39 // pred_region
        %s387 = smul.u32 8, %s16
        %p388 = scmp.lt.s32.totalorder %s387, 15
        %s389 = scalar_select %p388, %s387, 15
        %s390 = smul.addr %s389, 4
        %s391 = scalar_lea.vmem %s2, %s390
      $region44: #{restnet_down_block.6} parent=39 // pred_fallthru
        _
      // Predicated region
      $region45: #{restnet_down_block.6} parent=39 // pred_check
        %p392 = pneg %p112
      $region46: #{restnet_down_block.6} parent=39 // pred_check_branch
        %394 = sbr.rel (%p392) target = $region48
      $region47: #{restnet_down_block.6} parent=39 // pred_region
        %p395 = scmp.lt.s32.totalorder %s16, 1
        %s396 = scalar_select %p395, %s16, 1
        %s397 = smul.addr %s396, 2
        %s398 = scalar_lea.vmem %s3, %s397
      $region48: #{restnet_down_block.6} parent=39 // pred_fallthru
        _
    $region40: #{restnet_down_block.6} parent=5 // pred_fallthru
      _
  $region6: #{restnet_down_block.6} parent=0 // loop_footer
    %s14 = sadd.s32 1, %s10
  $region7: #{restnet_down_block.6} parent=0 // loop_footer_branch
    %9 = sbr.rel target = $region3
  $region8: #{restnet_down_block.6} parent=0 // loop_exit
    _

// kernel: restnet_down_block.7
$region0: #{restnet_down_block.7}
  #allocation0 [shape = 'u32[]', space=smem, size = 0x4, offset = 0x4, fixed_abs, tag = 'smem constant byte address 0x4 - core index']
  #allocation1 [shape = 'u32[72,128]{1,0:T(1,128)}', space=vmem, size = 0x9000, scoped, tag = 'internal scratch']
  %s0 = inlined_call_operand.vmem [shape: bf16[128,128], index: 0, kind: input, shape index: {}]
  %s1 = inlined_call_operand.vmem [shape: bf16[128,128], index: 1, kind: input, shape index: {}]
  %s2 = inlined_call_operand.vmem [shape: f32[1,128], index: 2, kind: input, shape index: {}]
  %s3 = inlined_call_operand.vmem [shape: f32[1,128], index: 3, kind: input, shape index: {}]
  %s4 = inlined_call_operand.vmem [shape: f32[1,128], index: 4, kind: input, shape index: {}]
  %s5 = inlined_call_operand.vmem [shape: f32[1,128], index: 5, kind: input, shape index: {}]
  %s6 = inlined_call_operand.vmem [shape: f32[128,128], index: 6, kind: output, shape index: {}]
  %s7 = sld [smem:[#allocation0]]
  $region57: #{restnet_down_block.7} parent=0
    _
  %s9 = ssub.s32 1, %s7
  %s10 = scalar_select 0, %s9, %s7
  loop: start=0, step=1, limit=4
  $region2: #{restnet_down_block.7} parent=0 // loop_pre_header
    _
  $region3: #{restnet_down_block.7} parent=0 // loop_header
    %s12 = sphi 0, %s16
    %p13 = scmp.ge.s32.totalorder %s12, 4
    %s22 = sphi 0, %s24
    %s25 = sphi 0, %s22
    %s26 = sphi 0, %s25
    %s42 = sphi 0, %s26
    %s48 = sphi 0, %s50
    %s51 = sphi 0, %s48
    %s52 = sphi 0, %s51
    %s68 = sphi 0, %s52
    %s72 = sphi 0, %s72
    %s74 = sphi 0, %s72
    %s75 = sphi 0, %s74
    %s89 = sphi 0, %s75
    %s93 = sphi 0, %s93
    %s95 = sphi 0, %s93
    %s96 = sphi 0, %s95
    %s110 = sphi 0, %s96
    %s114 = sphi 0, %s114
    %s116 = sphi 0, %s114
    %s117 = sphi 0, %s116
    %s131 = sphi 0, %s117
    %s135 = sphi 0, %s135
    %s137 = sphi 0, %s135
    %s138 = sphi 0, %s137
    %s152 = sphi 0, %s138
    %s158 = sphi 0, %s160
    %s161 = sphi 0, %s158
    %s162 = sphi 0, %s161
    %s178 = sphi 0, %s162
  $region4: #{restnet_down_block.7} parent=0 // loop_header_branch
    %15 = sbr.rel (%p13) target = $region8
  $region5: #{restnet_down_block.7} parent=0 // loop_body
    %s17 = ssub.s32 %s12, 1
    %s18 = ssub.s32 %s12, 2
    %s19 = sadd.s32 %s12, 1
    %s20 = ssub.s32 %s12, %s19
    %p21 = scmp.eq.s32.totalorder %s20, 0
    %s23 = sadd.s32 %s22, 1
    %s24 = scalar_select %p21, %s22, %s23
    %p27 = pneg %p21
    %p28 = scmp.eq.s32.totalorder %s12, 1
    %p29 = por %p27, %p28
    %p30 = scmp.ne.s32.totalorder %s22, %s25
    %p31 = scmp.eq.s32.totalorder %s12, 0
    %p32 = por %p30, %p31
    %p33 = scmp.ne.s32.totalorder %s22, %s25
    %p34 = scmp.eq.s32.totalorder %s17, 1
    %p35 = por %p33, %p34
    %p36 = scmp.ne.s32.totalorder %s25, %s26
    %p37 = scmp.eq.s32.totalorder %s17, 0
    %p38 = por %p36, %p37
    %p39 = scmp.ne.s32.totalorder %s25, %s26
    %p40 = scmp.eq.s32.totalorder %s18, 1
    %p41 = por %p39, %p40
    %p43 = scmp.ne.s32.totalorder %s26, %s42
    %p44 = scmp.eq.s32.totalorder %s18, 0
    %p45 = por %p43, %p44
    %s46 = ssub.s32 %s12, %s19
    %p47 = scmp.eq.s32.totalorder %s46, 0
    %s49 = sadd.s32 %s48, 1
    %s50 = scalar_select %p47, %s48, %s49
    %p53 = pneg %p47
    %p54 = scmp.eq.s32.totalorder %s12, 1
    %p55 = por %p53, %p54
    %p56 = scmp.ne.s32.totalorder %s48, %s51
    %p57 = scmp.eq.s32.totalorder %s12, 0
    %p58 = por %p56, %p57
    %p59 = scmp.ne.s32.totalorder %s48, %s51
    %p60 = scmp.eq.s32.totalorder %s17, 1
    %p61 = por %p59, %p60
    %p62 = scmp.ne.s32.totalorder %s51, %s52
    %p63 = scmp.eq.s32.totalorder %s17, 0
    %p64 = por %p62, %p63
    %p65 = scmp.ne.s32.totalorder %s51, %s52
    %p66 = scmp.eq.s32.totalorder %s18, 1
    %p67 = por %p65, %p66
    %p69 = scmp.ne.s32.totalorder %s52, %s68
    %p70 = scmp.eq.s32.totalorder %s18, 0
    %p71 = por %p69, %p70
    %s73 = sadd.s32 %s72, 1
    %p76 = scmp.eq.s32.totalorder %s12, 1
    %p77 = scmp.ne.s32.totalorder %s72, %s74
    %p78 = scmp.eq.s32.totalorder %s12, 0
    %p79 = por %p77, %p78
    %p80 = scmp.ne.s32.totalorder %s72, %s74
    %p81 = scmp.eq.s32.totalorder %s17, 1
    %p82 = por %p80, %p81
    %p83 = scmp.ne.s32.totalorder %s74, %s75
    %p84 = scmp.eq.s32.totalorder %s17, 0
    %p85 = por %p83, %p84
    %p86 = scmp.ne.s32.totalorder %s74, %s75
    %p87 = scmp.eq.s32.totalorder %s18, 1
    %p88 = por %p86, %p87
    %p90 = scmp.ne.s32.totalorder %s75, %s89
    %p91 = scmp.eq.s32.totalorder %s18, 0
    %p92 = por %p90, %p91
    %s94 = sadd.s32 %s93, 1
    %p97 = scmp.eq.s32.totalorder %s12, 1
    %p98 = scmp.ne.s32.totalorder %s93, %s95
    %p99 = scmp.eq.s32.totalorder %s12, 0
    %p100 = por %p98, %p99
    %p101 = scmp.ne.s32.totalorder %s93, %s95
    %p102 = scmp.eq.s32.totalorder %s17, 1
    %p103 = por %p101, %p102
    %p104 = scmp.ne.s32.totalorder %s95, %s96
    %p105 = scmp.eq.s32.totalorder %s17, 0
    %p106 = por %p104, %p105
    %p107 = scmp.ne.s32.totalorder %s95, %s96
    %p108 = scmp.eq.s32.totalorder %s18, 1
    %p109 = por %p107, %p108
    %p111 = scmp.ne.s32.totalorder %s96, %s110
    %p112 = scmp.eq.s32.totalorder %s18, 0
    %p113 = por %p111, %p112
    %s115 = sadd.s32 %s114, 1
    %p118 = scmp.eq.s32.totalorder %s12, 1
    %p119 = scmp.ne.s32.totalorder %s114, %s116
    %p120 = scmp.eq.s32.totalorder %s12, 0
    %p121 = por %p119, %p120
    %p122 = scmp.ne.s32.totalorder %s114, %s116
    %p123 = scmp.eq.s32.totalorder %s17, 1
    %p124 = por %p122, %p123
    %p125 = scmp.ne.s32.totalorder %s116, %s117
    %p126 = scmp.eq.s32.totalorder %s17, 0
    %p127 = por %p125, %p126
    %p128 = scmp.ne.s32.totalorder %s116, %s117
    %p129 = scmp.eq.s32.totalorder %s18, 1
    %p130 = por %p128, %p129
    %p132 = scmp.ne.s32.totalorder %s117, %s131
    %p133 = scmp.eq.s32.totalorder %s18, 0
    %p134 = por %p132, %p133
    %s136 = sadd.s32 %s135, 1
    %p139 = scmp.eq.s32.totalorder %s12, 1
    %p140 = scmp.ne.s32.totalorder %s135, %s137
    %p141 = scmp.eq.s32.totalorder %s12, 0
    %p142 = por %p140, %p141
    %p143 = scmp.ne.s32.totalorder %s135, %s137
    %p144 = scmp.eq.s32.totalorder %s17, 1
    %p145 = por %p143, %p144
    %p146 = scmp.ne.s32.totalorder %s137, %s138
    %p147 = scmp.eq.s32.totalorder %s17, 0
    %p148 = por %p146, %p147
    %p149 = scmp.ne.s32.totalorder %s137, %s138
    %p150 = scmp.eq.s32.totalorder %s18, 1
    %p151 = por %p149, %p150
    %p153 = scmp.ne.s32.totalorder %s138, %s152
    %p154 = scmp.eq.s32.totalorder %s18, 0
    %p155 = por %p153, %p154
    %s156 = ssub.s32 %s12, %s19
    %p157 = scmp.eq.s32.totalorder %s156, 0
    %s159 = sadd.s32 %s158, 1
    %s160 = scalar_select %p157, %s158, %s159
    %p163 = pneg %p157
    %p164 = scmp.eq.s32.totalorder %s12, 1
    %p165 = por %p163, %p164
    %p166 = scmp.ne.s32.totalorder %s158, %s161
    %p167 = scmp.eq.s32.totalorder %s12, 0
    %p168 = por %p166, %p167
    %p169 = scmp.ne.s32.totalorder %s158, %s161
    %p170 = scmp.eq.s32.totalorder %s17, 1
    %p171 = por %p169, %p170
    %p172 = scmp.ne.s32.totalorder %s161, %s162
    %p173 = scmp.eq.s32.totalorder %s17, 0
    %p174 = por %p172, %p173
    %p175 = scmp.ne.s32.totalorder %s161, %s162
    %p176 = scmp.eq.s32.totalorder %s18, 1
    %p177 = por %p175, %p176
    %p179 = scmp.ne.s32.totalorder %s162, %s178
    %p180 = scmp.eq.s32.totalorder %s18, 0
    %p181 = por %p179, %p180
    %p182 = scmp.le.s32.totalorder 1, %s12
    %p183 = scmp.lt.s32.totalorder %s12, 3
    %p184 = pnand %p182, %p183
    %p185 = pneg %p184
    // Predicated region
    $region9: #{restnet_down_block.7} parent=5 // pred_check
      _
    $region10: #{restnet_down_block.7} parent=5 // pred_check_branch
      %187 = sbr.rel (%p184) target = $region12
    $region11: #{restnet_down_block.7} parent=5 // pred_region
      %s188 = ssub.s32 %s12, 1
      // Predicated region
      $region13: #{restnet_down_block.7} parent=11 // pred_check
        %p189 = pneg %p85
      $region14: #{restnet_down_block.7} parent=11 // pred_check_branch
        %191 = sbr.rel (%p189) target = $region16
      $region15: #{restnet_down_block.7} parent=11 // pred_region
        _
      $region16: #{restnet_down_block.7} parent=11 // pred_fallthru
        _
      // Predicated region
      $region17: #{restnet_down_block.7} parent=11 // pred_check
        %p192 = pneg %p106
      $region18: #{restnet_down_block.7} parent=11 // pred_check_branch
        %194 = sbr.rel (%p192) target = $region20
      $region19: #{restnet_down_block.7} parent=11 // pred_region
        _
      $region20: #{restnet_down_block.7} parent=11 // pred_fallthru
        _
      // Predicated region
      $region21: #{restnet_down_block.7} parent=11 // pred_check
        %p195 = pneg %p127
      $region22: #{restnet_down_block.7} parent=11 // pred_check_branch
        %197 = sbr.rel (%p195) target = $region24
      $region23: #{restnet_down_block.7} parent=11 // pred_region
        _
      $region24: #{restnet_down_block.7} parent=11 // pred_fallthru
        _
      // Predicated region
      $region25: #{restnet_down_block.7} parent=11 // pred_check
        %p198 = pneg %p148
      $region26: #{restnet_down_block.7} parent=11 // pred_check_branch
        %200 = sbr.rel (%p198) target = $region28
      $region27: #{restnet_down_block.7} parent=11 // pred_region
        _
      $region28: #{restnet_down_block.7} parent=11 // pred_fallthru
        _
    $region12: #{restnet_down_block.7} parent=5 // pred_fallthru
      _
    %p201 = scmp.lt.s32.totalorder %s12, 2
    // Predicated region
    $region29: #{restnet_down_block.7} parent=5 // pred_check
      %p202 = pneg %p201
    $region30: #{restnet_down_block.7} parent=5 // pred_check_branch
      %204 = sbr.rel (%p202) target = $region32
    $region31: #{restnet_down_block.7} parent=5 // pred_region
      // Predicated region
      $region33: #{restnet_down_block.7} parent=31 // pred_check
        %p205 = pneg %p32
      $region34: #{restnet_down_block.7} parent=31 // pred_check_branch
        %207 = sbr.rel (%p205) target = $region36
      $region35: #{restnet_down_block.7} parent=31 // pred_region
        %s208 = smul.u32 8, %s12
        %p209 = scmp.lt.s32.totalorder %s208, 15
        %s210 = scalar_select %p209, %s208, 15
        %s211 = smul.addr %s210, 4
        %s212 = scalar_lea.vmem %s0, %s211
        %s213 = smul.u32 8, %s12
      $region36: #{restnet_down_block.7} parent=31 // pred_fallthru
        _
      // Predicated region
      $region37: #{restnet_down_block.7} parent=31 // pred_check
        %p214 = pneg %p58
      $region38: #{restnet_down_block.7} parent=31 // pred_check_branch
        %216 = sbr.rel (%p214) target = $region40
      $region39: #{restnet_down_block.7} parent=31 // pred_region
        %s217 = smul.u32 8, %s12
        %p218 = scmp.lt.s32.totalorder %s217, 15
        %s219 = scalar_select %p218, %s217, 15
        %s220 = smul.addr %s219, 4
        %s221 = scalar_lea.vmem %s1, %s220
        %s222 = smul.u32 8, %s12
      $region40: #{restnet_down_block.7} parent=31 // pred_fallthru
        _
    $region32: #{restnet_down_block.7} parent=5 // pred_fallthru
      _
    %p223 = scmp.le.s32.totalorder 1, %s12
    %p224 = scmp.lt.s32.totalorder %s12, 3
    %p225 = pnand %p223, %p224
    %p226 = pneg %p225
    // Predicated region
    $region41: #{restnet_down_block.7} parent=5 // pred_check
      _
    $region42: #{restnet_down_block.7} parent=5 // pred_check_branch
      %228 = sbr.rel (%p225) target = $region44
    $region43: #{restnet_down_block.7} parent=5 // pred_region
      %s229 = ssub.s32 %s12, 1
      %s230 = smul.u32 8, %s17
      %p231 = scmp.lt.s32.totalorder %s230, 15
      %s232 = scalar_select %p231, %s230, 15
      %s233 = smul.addr %s232, 4
      %s234 = scalar_lea.vmem %s0, %s233
      %p235 = pneg %p38
      %p236 = pneg %p35
      %s237 = smul.u32 8, %s17
      %p238 = scmp.lt.s32.totalorder %s237, 15
      %s239 = scalar_select %p238, %s237, 15
      %s240 = smul.addr %s239, 4
      %s241 = scalar_lea.vmem %s1, %s240
      %p242 = pneg %p64
      %p243 = pneg %p61
      %p244 = pneg %p85
      %p245 = pneg %p82
      %p246 = pneg %p106
      %p247 = pneg %p103
      %p248 = pneg %p127
      %p249 = pneg %p124
      %p250 = pneg %p148
      %p251 = pneg %p145
      %p252 = pneg %p174
      %p253 = pneg %p171
      %s254 = smul.u32 8, %s17
      %p255 = scmp.lt.s32.totalorder %s254, 15
      %s256 = scalar_select %p255, %s254, 15
      %s257 = smul.addr %s256, 8
      %s258 = scalar_lea.vmem %s6, %s257
      %s259 = smul.u32 8, %s17
      %p260 = scmp.lt.s32.totalorder %s259, 15
      %s261 = scalar_select %p260, %s259, 15
      %s262 = smul.addr %s261, 4
      %s263 = scalar_lea.vmem %s0, %s262
      %s264 = smul.u32 8, %s17
      %s265 = smul.u32 8, %s17
      %p266 = scmp.lt.s32.totalorder %s265, 15
      %s267 = scalar_select %p266, %s265, 15
      %s268 = smul.addr %s267, 4
      %s269 = scalar_lea.vmem %s1, %s268
      %s270 = smul.u32 8, %s17
      %s271 = smul.u32 8, %s17
      %p272 = scmp.lt.s32.totalorder %s271, 15
      %s273 = scalar_select %p272, %s271, 15
      %s274 = smul.addr %s273, 8
      %s275 = scalar_lea.vmem %s6, %s274
      %s276 = smul.u32 8, %s17
      %v277 = vld [vmem:[%s263] sm:$0xf]
      %v278 = vld [vmem:[%s263 + $0x4] sm:$0xf]
      %v279 = vld [vmem:[%s263 + $0x8] sm:$0xf]
      %v280 = vld [vmem:[%s263 + $0xc] sm:$0xf]
      %v281 = vld [vmem:[%s263 + $0x10] sm:$0xf]
      %v282 = vld [vmem:[%s263 + $0x14] sm:$0xf]
      %v283 = vld [vmem:[%s263 + $0x18] sm:$0xf]
      %v284 = vld [vmem:[%s263 + $0x1c] sm:$0xf]
      %v285 = vunpack.c.l.bf16 %v277
      %v286 = vunpack.c.l.bf16 %v278
      %v287 = vunpack.c.l.bf16 %v279
      %v288 = vunpack.c.l.bf16 %v280
      %v289 = vunpack.c.l.bf16 %v281
      %v290 = vunpack.c.l.bf16 %v282
      %v291 = vunpack.c.l.bf16 %v283
      %v292 = vunpack.c.l.bf16 %v284
      %v293 = vld [vmem:[%s269] sm:$0xf]
      %v294 = vld [vmem:[%s269 + $0x4] sm:$0xf]
      %v295 = vld [vmem:[%s269 + $0x8] sm:$0xf]
      %v296 = vld [vmem:[%s269 + $0xc] sm:$0xf]
      %v297 = vld [vmem:[%s269 + $0x10] sm:$0xf]
      %v298 = vld [vmem:[%s269 + $0x14] sm:$0xf]
      %v299 = vld [vmem:[%s269 + $0x18] sm:$0xf]
      %v300 = vld [vmem:[%s269 + $0x1c] sm:$0xf]
      %v301 = vunpack.c.l.bf16 %v293
      %v302 = vunpack.c.l.bf16 %v294
      %v303 = vunpack.c.l.bf16 %v295
      %v304 = vunpack.c.l.bf16 %v296
      %v305 = vunpack.c.l.bf16 %v297
      %v306 = vunpack.c.l.bf16 %v298
      %v307 = vunpack.c.l.bf16 %v299
      %v308 = vunpack.c.l.bf16 %v300
      %v309 = vld [vmem:[%s2] sm:$0x1]
      %v311 = vperm.slane %v309, 0
      %v313 = vmul.f32 %v285, %v311
      %v314 = vmul.f32 %v286, %v311
      %v315 = vmul.f32 %v287, %v311
      %v316 = vmul.f32 %v288, %v311
      %v317 = vmul.f32 %v289, %v311
      %v318 = vmul.f32 %v290, %v311
      %v319 = vmul.f32 %v291, %v311
      %v320 = vmul.f32 %v292, %v311
      %v321 = vld [vmem:[%s3] sm:$0x1]
      %v323 = vperm.slane %v321, 0
      %v325 = vadd.f32 %v313, %v323
      %v326 = vadd.f32 %v314, %v323
      %v327 = vadd.f32 %v315, %v323
      %v328 = vadd.f32 %v316, %v323
      %v329 = vadd.f32 %v317, %v323
      %v330 = vadd.f32 %v318, %v323
      %v331 = vadd.f32 %v319, %v323
      %v332 = vadd.f32 %v320, %v323
      %v333 = vld [vmem:[%s4] sm:$0x1]
      %v335 = vperm.slane %v333, 0
      %v337 = vmul.f32 %v301, %v335
      %v338 = vmul.f32 %v302, %v335
      %v339 = vmul.f32 %v303, %v335
      %v340 = vmul.f32 %v304, %v335
      %v341 = vmul.f32 %v305, %v335
      %v342 = vmul.f32 %v306, %v335
      %v343 = vmul.f32 %v307, %v335
      %v344 = vmul.f32 %v308, %v335
      %v345 = vadd.f32 %v325, %v337
      %v346 = vadd.f32 %v326, %v338
      %v347 = vadd.f32 %v327, %v339
      %v348 = vadd.f32 %v328, %v340
      %v349 = vadd.f32 %v329, %v341
      %v350 = vadd.f32 %v330, %v342
      %v351 = vadd.f32 %v331, %v343
      %v352 = vadd.f32 %v332, %v344
      %v353 = vld [vmem:[%s5] sm:$0x1]
      %v355 = vperm.slane %v353, 0
      %v357 = vadd.f32 %v345, %v355
      %v358 = vadd.f32 %v346, %v355
      %v359 = vadd.f32 %v347, %v355
      %v360 = vadd.f32 %v348, %v355
      %v361 = vadd.f32 %v349, %v355
      %v362 = vadd.f32 %v350, %v355
      %v363 = vadd.f32 %v351, %v355
      %v364 = vadd.f32 %v352, %v355
      %v365 = vmax.f32 %v357, 0.0
      %v366 = vmax.f32 %v358, 0.0
      %v367 = vmax.f32 %v359, 0.0
      %v368 = vmax.f32 %v360, 0.0
      %v369 = vmax.f32 %v361, 0.0
      %v370 = vmax.f32 %v362, 0.0
      %v371 = vmax.f32 %v363, 0.0
      %v372 = vmax.f32 %v364, 0.0
      %373 = vst [vmem:[%s275] sm:$0xff] %v365
      %374 = vst [vmem:[%s275 + $0x8] sm:$0xff] %v366
      %375 = vst [vmem:[%s275 + $0x10] sm:$0xff] %v367
      %376 = vst [vmem:[%s275 + $0x18] sm:$0xff] %v368
      %377 = vst [vmem:[%s275 + $0x20] sm:$0xff] %v369
      %378 = vst [vmem:[%s275 + $0x28] sm:$0xff] %v370
      %379 = vst [vmem:[%s275 + $0x30] sm:$0xff] %v371
      %380 = vst [vmem:[%s275 + $0x38] sm:$0xff] %v372
      %s381 = smul.u32 8, %s17
      %p382 = scmp.lt.s32.totalorder %s381, 15
      %s383 = scalar_select %p382, %s381, 15
      %s384 = smul.addr %s383, 8
      %s385 = scalar_lea.vmem %s6, %s384
      // Predicated region
      $region45: #{restnet_down_block.7} parent=43 // pred_check
        %p386 = pneg %p171
      $region46: #{restnet_down_block.7} parent=43 // pred_check_branch
        %388 = sbr.rel (%p386) target = $region48
      $region47: #{restnet_down_block.7} parent=43 // pred_region
        %s389 = smul.u32 8, %s17
      $region48: #{restnet_down_block.7} parent=43 // pred_fallthru
        _
    $region44: #{restnet_down_block.7} parent=5 // pred_fallthru
      _
    %p390 = scmp.le.s32.totalorder 2, %s12
    // Predicated region
    $region49: #{restnet_down_block.7} parent=5 // pred_check
      %p391 = pneg %p390
    $region50: #{restnet_down_block.7} parent=5 // pred_check_branch
      %393 = sbr.rel (%p391) target = $region52
    $region51: #{restnet_down_block.7} parent=5 // pred_region
      %s394 = ssub.s32 %s12, 2
      // Predicated region
      $region53: #{restnet_down_block.7} parent=51 // pred_check
        %p395 = pneg %p177
      $region54: #{restnet_down_block.7} parent=51 // pred_check_branch
        %397 = sbr.rel (%p395) target = $region56
      $region55: #{restnet_down_block.7} parent=51 // pred_region
        %s398 = smul.u32 8, %s18
        %p399 = scmp.lt.s32.totalorder %s398, 15
        %s400 = scalar_select %p399, %s398, 15
        %s401 = smul.addr %s400, 8
        %s402 = scalar_lea.vmem %s6, %s401
      $region56: #{restnet_down_block.7} parent=51 // pred_fallthru
        _
    $region52: #{restnet_down_block.7} parent=5 // pred_fallthru
      _
  $region6: #{restnet_down_block.7} parent=0 // loop_footer
    %s16 = sadd.s32 1, %s12
  $region7: #{restnet_down_block.7} parent=0 // loop_footer_branch
    %11 = sbr.rel target = $region3
  $region8: #{restnet_down_block.7} parent=0 // loop_exit
    _

</llo_original>
